<compile_context>
chip_gen: v6e
topology: v6e:2x2x1
jax: 0.10.0
libtpu: 0.0.40
codegen_flags: <defaults>
</compile_context>

<pallas_src>
import functools

import jax
import jax.numpy as jnp
import numpy as np
from jax import lax
from jax.experimental import pallas as pl
from jax.experimental.pallas import tpu as pltpu

LANE = 128


def _silu(x):
    # SiLU = x * sigmoid(x); exp goes to the EUP, approx reciprocal stays off the VPU.
    return x * pl.reciprocal(1.0 + jnp.exp(-x), approx=True)


def _round_up(v, m):
    return (v + m - 1) // m * m


def _pad_axis(a, axis, new_size):
    pad = [(0, 0)] * a.ndim
    pad[axis] = (0, new_size - a.shape[axis])
    return jnp.pad(a, pad)


def _pick_tile_h(H, W):
    """Largest divisor of H with at most ~2048 rows per tile (VMEM-friendly)."""
    best = 1
    for t in range(1, H + 1):
        if H % t == 0 and t * W <= 2048:
            best = t
    return best


def _pick_vmem_limit():
    # ~96 MiB on v5e/v6e (128 MiB physical VMEM), ~48 MiB on v7x (64 MiB physical).
    try:
        cap = pltpu.get_tpu_info().vmem_capacity_bytes
    except Exception:
        cap = 64 * 1024 * 1024
    return int(min(100 * 1024 * 1024, cap * 3 // 4))


# ----------------------------- fused C3 kernel (per row tile) -----------------------------
def _c3_fused_kernel(x_ref, xt_ref, xb_ref, w12_ref, b12_ref, wm1_ref, bm1_ref,
                     wm2_ref, bm2_ref, w3_ref, b3_ref, o_ref, *, W, TILE_H, c_p):
    h = pl.program_id(1)
    THW = TILE_H * W
    RW = (TILE_H + 2) * W                           # tile rows + one halo row above/below

    # Halo-extended input tile, flattened to (rows, channels).
    xe = jnp.concatenate([xt_ref[0], x_ref[0], xb_ref[0]], axis=0)          # (RW, C1p)

    # C3.cv1 | C3.cv2 as one fused 1x1 GEMM (BN scale pre-folded into weights).
    y12 = _silu(jnp.dot(xe, w12_ref[...], preferred_element_type=jnp.float32)
                + b12_ref[...])                                             # (RW, 2*c_p)
    y1 = y12[W:W + THW, :c_p]                       # this tile's own rows (lane-aligned split)
    y2 = y12[W:W + THW, c_p:]

    # Bottleneck.cv1 (1x1), recomputed for the halo rows; bf16 MXU, f32 accumulate.
    te = _silu(jnp.dot(y12[:, :c_p].astype(jnp.bfloat16), wm1_ref[...],
                       preferred_element_type=jnp.float32) + bm1_ref[...])  # (RW, c_p)

    # Zero the halo t-rows that lie outside the image (3x3 conv zero padding),
    # with in-kernel iota masks (no (R,1) HBM mask inputs).
    r = lax.broadcasted_iota(jnp.int32, (RW, 1), 0)
    row_ok = ((r >= W) | (h > 0)) & ((r < RW - W) | (h < pl.num_programs(1) - 1))
    te = jnp.where(row_ok, te, 0.0)

    # Bottleneck.cv2 (3x3, pad=1): one kx tap at a time (sublane roll on the XLU +
    # W-boundary mask); the 3 ky slices are stacked along K so each kx is a single
    # K=3*c_p GEMM (fills the 256-deep v6e/v7x MXU).
    col = r % W
    acc = jnp.zeros((THW, c_p), jnp.float32)
    for kx in range(3):
        if kx == 0:
            tap = jnp.where(col != 0, pltpu.roll(te, 1, axis=0), 0.0)           # src col w-1
        elif kx == 1:
            tap = te                                                            # src col w
        else:
            tap = jnp.where(col != W - 1, pltpu.roll(te, RW - 1, axis=0), 0.0)  # src col w+1
        tap3 = jnp.concatenate(
            [tap[0:THW], tap[W:W + THW], tap[2 * W:2 * W + THW]],
            axis=1).astype(jnp.bfloat16)                                    # (THW, 3*c_p)
        acc = acc + jnp.dot(tap3, wm2_ref[kx], preferred_element_type=jnp.float32)
    tb = _silu(acc + bm2_ref[...])                  # Bottleneck.cv2 output

    ym = y1 + tb                                    # Bottleneck shortcut (c1 == c2)
    # C3.cv3 on concat([ym, y2], channel) as a single K=2*c_p GEMM.
    y3 = jnp.dot(jnp.concatenate([ym, y2], axis=1).astype(jnp.bfloat16), w3_ref[...],
                 preferred_element_type=jnp.float32) + b3_ref[...]
    o_ref[0] = _silu(y3)


# --------------------------------------- wrapper ---------------------------------------
def c3_forward(x_nchw, params, *, tile_h=None):
    (w1, s1, b1), (w2, s2, b2), (wm1, sm1, bm1), (wm2, sm2, bm2), (w3, s3, b3) = params
    N, C1, H, W = x_nchw.shape
    c_ = w1.shape[1]
    c2 = w3.shape[1]
    assert W % 8 == 0, "W must be a multiple of 8 (sublane-aligned ky*W tap slices)"
    if tile_h is None:
        tile_h = _pick_tile_h(H, W)
    assert H % tile_h == 0, "H must be divisible by tile_h"
    n_th = H // tile_h
    THW = tile_h * W
    C1p = _round_up(C1, LANE)
    c_p = _round_up(c_, LANE)
    c2p = _round_up(c2, LANE)

    # NCHW (PyTorch) -> NHWC, channels zero-padded to lane-dense width.
    x = jnp.transpose(x_nchw, (0, 2, 3, 1)).astype(jnp.float32)
    x = _pad_axis(x, 3, C1p)                                                # (N, H, W, C1p)

    # Halo rows above/below each row tile (zero rows at the image border).
    xz = jnp.pad(x, ((0, 0), (1, 1), (0, 0), (0, 0)))                       # (N, H+2, W, C1p)
    top_idx = np.arange(n_th) * tile_h                                      # row (tile_start-1) in padded coords
    bot_idx = top_idx + tile_h + 1                                          # row (tile_end)     in padded coords
    x_top = xz[:, top_idx].reshape(N, n_th * W, C1p)
    x_bot = xz[:, bot_idx].reshape(N, n_th * W, C1p)
    x = x.reshape(N, H * W, C1p)

    # Fold BN scale into conv weights on the host; zero-pad to lane-dense shapes.
    def fold(w, s):
        return (w * s).astype(jnp.float32)

    w12 = jnp.concatenate([_pad_axis(_pad_axis(fold(w1, s1), 0, C1p), 1, c_p),
                           _pad_axis(_pad_axis(fold(w2, s2), 0, C1p), 1, c_p)], axis=1)
    b12 = jnp.concatenate([_pad_axis(b1.astype(jnp.float32), 1, c_p),
                           _pad_axis(b2.astype(jnp.float32), 1, c_p)], axis=1)
    wm1p = _pad_axis(_pad_axis(fold(wm1, sm1), 0, c_p), 1, c_p).astype(jnp.bfloat16)
    bm1p = _pad_axis(bm1.astype(jnp.float32), 1, c_p)
    wm2f = _pad_axis(_pad_axis((wm2 * sm2.reshape(1, 1, 1, c_)).astype(jnp.float32),
                               2, c_p), 3, c_p)                             # (3,3,c_p,c_p) HWIO
    wm2kx = jnp.stack([jnp.concatenate([wm2f[ky, kx] for ky in range(3)], axis=0)
                       for kx in range(3)], axis=0).astype(jnp.bfloat16)    # (3, 3*c_p, c_p)
    bm2p = _pad_axis(bm2.astype(jnp.float32), 1, c_p)
    w3f = fold(w3, s3)
    w3p = jnp.concatenate([_pad_axis(_pad_axis(w3f[:c_], 0, c_p), 1, c2p),
                           _pad_axis(_pad_axis(w3f[c_:], 0, c_p), 1, c2p)],
                          axis=0).astype(jnp.bfloat16)                      # (2*c_p, c2p)
    b3p = _pad_axis(b3.astype(jnp.float32), 1, c2p)

    def _full(shape):
        nd = len(shape)
        return pl.BlockSpec(shape, lambda n, h, nd=nd: (0,) * nd)

    out = pl.pallas_call(
        functools.partial(_c3_fused_kernel, W=W, TILE_H=tile_h, c_p=c_p),
        out_shape=jax.ShapeDtypeStruct((N, H * W, c2p), jnp.float32),
        grid_spec=pltpu.PrefetchScalarGridSpec(
            num_scalar_prefetch=0,
            grid=(N, n_th),
            in_specs=[
                pl.BlockSpec((1, THW, C1p), lambda n, h: (n, h, 0)),   # x row tile
                pl.BlockSpec((1, W, C1p), lambda n, h: (n, h, 0)),     # top halo row
                pl.BlockSpec((1, W, C1p), lambda n, h: (n, h, 0)),     # bottom halo row
                _full((C1p, 2 * c_p)), _full((1, 2 * c_p)),
                _full((c_p, c_p)), _full((1, c_p)),
                _full((3, 3 * c_p, c_p)), _full((1, c_p)),
                _full((2 * c_p, c2p)), _full((1, c2p)),
            ],
            out_specs=pl.BlockSpec((1, THW, c2p), lambda n, h: (n, h, 0)),
        ),
        compiler_params=pltpu.CompilerParams(
            dimension_semantics=("parallel", "parallel"),
            vmem_limit_bytes=_pick_vmem_limit(),
        ),
    )(x, x_top, x_bot, w12, b12, wm1p, bm1p, wm2kx, bm2p, w3p, b3p)

    out = out[:, :, :c2].reshape(N, H, W, c2)                               # drop padded lanes
    return jnp.transpose(out, (0, 3, 1, 2))                                 # back to NCHW


# -------------------- deterministic parameter init (Conv + folded BN) --------------------
def init_params(key, c1, c2, n=1, e=0.5):
    assert n == 1, "this script implements the default n=1 Bottleneck stack"
    c_ = int(c2 * e)

    def conv_bn(k, cin, cout, ksize):
        kk = jax.random.split(k, 5)
        if ksize == 1:
            w = jax.random.normal(kk[0], (cin, cout), jnp.float32) * 0.3
        else:
            w = jax.random.normal(kk[0], (ksize, ksize, cin, cout), jnp.float32) * 0.3  # HWIO
        gamma = jax.random.uniform(kk[1], (cout,), jnp.float32, 0.8, 1.2)
        beta = jax.random.normal(kk[2], (cout,), jnp.float32) * 0.05
        mean = jax.random.normal(kk[3], (cout,), jnp.float32) * 0.05
        var = jax.random.uniform(kk[4], (cout,), jnp.float32, 0.5, 1.5)
        eps = 1e-3  # BatchNorm2d(c, 0.001, 0.03) -> eps = 0.001
        scale = gamma / jnp.sqrt(var + eps)
        bias = beta - mean * scale
        return w, scale.reshape(1, cout), bias.reshape(1, cout)

    keys = jax.random.split(key, 5)
    p_cv1 = conv_bn(keys[0], c1, c_, 1)
    p_cv2 = conv_bn(keys[1], c1, c_, 1)
    p_m1 = conv_bn(keys[2], c_, c_, 1)       # Bottleneck.cv1 (e=1.0)
    p_m2 = conv_bn(keys[3], c_, c_, 3)       # Bottleneck.cv2 (3x3, pad=1)
    p_cv3 = conv_bn(keys[4], 2 * c_, c2, 1)
    return p_cv1, p_cv2, p_m1, p_m2, p_cv3


# -------------------- pure-JAX reference (for correctness check) -------------------------
def c3_reference(x_nchw, params):
    (w1, s1, b1), (w2, s2, b2), (wm1, sm1, bm1), (wm2, sm2, bm2), (w3, s3, b3) = params
    x = jnp.transpose(x_nchw, (0, 2, 3, 1)).astype(jnp.float32)

    def conv_bn_silu(inp, w, s, b):
        if w.ndim == 2:
            w = w.reshape(1, 1, *w.shape)
        k = w.shape[0]
        y = lax.conv_general_dilated(
            inp, w, window_strides=(1, 1), padding=[(k // 2, k // 2)] * 2,
            dimension_numbers=("NHWC", "HWIO", "NHWC"))
        y = y * s.reshape(1, 1, 1, -1) + b.reshape(1, 1, 1, -1)
        return y * jax.nn.sigmoid(y)

    y1 = conv_bn_silu(x, w1, s1, b1)
    y2 = conv_bn_silu(x, w2, s2, b2)
    t = conv_bn_silu(y1, wm1, sm1, bm1)
    t2 = conv_bn_silu(t, wm2, sm2, bm2)
    ym = y1 + t2
    out = conv_bn_silu(jnp.concatenate([ym, y2], axis=-1), w3, s3, b3)
    return jnp.transpose(out, (0, 3, 1, 2))


if __name__ == "__main__":
    key = jax.random.PRNGKey(0)
    kx_, kp = jax.random.split(key)
    N, C1, C2, H, W = 2, 4, 4, 16, 16
    x = jax.random.normal(kx_, (N, C1, H, W), jnp.float32)  # PyTorch-style NCHW input
    params = init_params(kp, C1, C2, n=1, e=0.5)

    # tile_h=4 -> 4 row tiles per image, exercising the halo-recompute path.
    out = jax.block_until_ready(c3_forward(x, params, tile_h=4))
    ref = jax.block_until_ready(c3_reference(x, params))

    assert out.shape == (N, C2, H, W), out.shape
    # bf16 MXU operands + EUP approx reciprocal => slightly looser tolerance vs f32 reference.
    np.testing.assert_allclose(np.asarray(out), np.asarray(ref), rtol=3e-2, atol=3e-2)
    print("KERNEL_OK")
</pallas_src>

<mosaic_0001>
module attributes {stable_mosaic.version = 11 : i64} {
  func.func @_c3_fused_kernel(%arg0: i32, %arg1: i32, %arg2: memref<1x64x128xf32, #tpu.memory_space<vmem>>, %arg3: memref<1x16x128xf32, #tpu.memory_space<vmem>>, %arg4: memref<1x16x128xf32, #tpu.memory_space<vmem>>, %arg5: memref<128x256xf32, #tpu.memory_space<vmem>>, %arg6: memref<1x256xf32, #tpu.memory_space<vmem>>, %arg7: memref<128x128xbf16, #tpu.memory_space<vmem>>, %arg8: memref<1x128xf32, #tpu.memory_space<vmem>>, %arg9: memref<3x384x128xbf16, #tpu.memory_space<vmem>>, %arg10: memref<1x128xf32, #tpu.memory_space<vmem>>, %arg11: memref<256x128xbf16, #tpu.memory_space<vmem>>, %arg12: memref<1x128xf32, #tpu.memory_space<vmem>>, %arg13: memref<1x64x128xf32, #tpu.memory_space<vmem>>) attributes {dimension_semantics = [#tpu.dimension_semantics<parallel>, #tpu.dimension_semantics<parallel>], iteration_bounds = array<i64: 2, 4>, scalar_prefetch = 0 : i64, scratch_operands = 0 : i64, tpu.core_type = #tpu.core_type<tc>, window_params = [{transform_indices = @transform_0, window_bounds = array<i64: 1, 64, 128>}, {transform_indices = @transform_1, window_bounds = array<i64: 1, 16, 128>}, {transform_indices = @transform_2, window_bounds = array<i64: 1, 16, 128>}, {pipeline_mode = #tpu.pipeline_mode<synchronous>, transform_indices = @transform_3, window_bounds = array<i64: 128, 256>}, {pipeline_mode = #tpu.pipeline_mode<synchronous>, transform_indices = @transform_4, window_bounds = array<i64: 1, 256>}, {pipeline_mode = #tpu.pipeline_mode<synchronous>, transform_indices = @transform_5, window_bounds = array<i64: 128, 128>}, {pipeline_mode = #tpu.pipeline_mode<synchronous>, transform_indices = @transform_6, window_bounds = array<i64: 1, 128>}, {pipeline_mode = #tpu.pipeline_mode<synchronous>, transform_indices = @transform_7, window_bounds = array<i64: 3, 384, 128>}, {pipeline_mode = #tpu.pipeline_mode<synchronous>, transform_indices = @transform_8, window_bounds = array<i64: 1, 128>}, {pipeline_mode = #tpu.pipeline_mode<synchronous>, transform_indices = @transform_9, window_bounds = array<i64: 256, 128>}, {pipeline_mode = #tpu.pipeline_mode<synchronous>, transform_indices = @transform_10, window_bounds = array<i64: 1, 128>}, {transform_indices = @transform_11, window_bounds = array<i64: 1, 64, 128>}]} {
    %c0 = arith.constant 0 : index
    %c0_0 = arith.constant 0 : index
    %c0_1 = arith.constant 0 : index
    %0 = vector.load %arg3[%c0, %c0_0, %c0_1] : memref<1x16x128xf32, #tpu.memory_space<vmem>>, vector<1x16x128xf32>
    %1 = vector.shape_cast %0 : vector<1x16x128xf32> to vector<16x128xf32>
    %c0_2 = arith.constant 0 : index
    %c0_3 = arith.constant 0 : index
    %c0_4 = arith.constant 0 : index
    %2 = vector.load %arg2[%c0_2, %c0_3, %c0_4] : memref<1x64x128xf32, #tpu.memory_space<vmem>>, vector<1x64x128xf32>
    %3 = vector.shape_cast %2 : vector<1x64x128xf32> to vector<64x128xf32>
    %c0_5 = arith.constant 0 : index
    %c0_6 = arith.constant 0 : index
    %c0_7 = arith.constant 0 : index
    %4 = vector.load %arg4[%c0_5, %c0_6, %c0_7] : memref<1x16x128xf32, #tpu.memory_space<vmem>>, vector<1x16x128xf32>
    %5 = vector.shape_cast %4 : vector<1x16x128xf32> to vector<16x128xf32>
    %6 = tpu.concatenate %1, %3, %5 in 0 : vector<16x128xf32>, vector<64x128xf32>, vector<16x128xf32> -> vector<96x128xf32>
    %c0_8 = arith.constant 0 : index
    %c0_9 = arith.constant 0 : index
    %7 = vector.load %arg5[%c0_8, %c0_9] : memref<128x256xf32, #tpu.memory_space<vmem>>, vector<128x256xf32>
    %cst = arith.constant dense<0.000000e+00> : vector<96x256xf32>
    %8 = tpu.matmul %6, %7, %cst {dimension_numbers = #tpu.dot_dimension_numbers<[1], [0], [0], [1], [0, 0, 1, 1], [], []>} : vector<96x128xf32>, vector<128x256xf32>, vector<96x256xf32> -> vector<96x256xf32>
    %c0_10 = arith.constant 0 : index
    %c0_11 = arith.constant 0 : index
    %9 = vector.load %arg6[%c0_10, %c0_11] : memref<1x256xf32, #tpu.memory_space<vmem>>, vector<1x256xf32>
    %10 = vector.broadcast %9 : vector<1x256xf32> to vector<96x256xf32>
    %11 = arith.addf %8, %10 : vector<96x256xf32>
    %cst_12 = arith.constant 0.000000e+00 : f32
    %12 = vector.broadcast %cst_12 : f32 to vector<96x256xf32>
    %13 = arith.subf %12, %11 : vector<96x256xf32>
    %14 = math.exp %13 : vector<96x256xf32>
    %cst_13 = arith.constant 1.000000e+00 : f32
    %15 = vector.broadcast %cst_13 : f32 to vector<96x256xf32>
    %16 = arith.addf %15, %14 : vector<96x256xf32>
    %17 = tpu.reciprocal %16 {approx = true} : vector<96x256xf32> -> vector<96x256xf32>
    %18 = arith.mulf %11, %17 : vector<96x256xf32>
    %19 = vector.extract_strided_slice %18 {offsets = [16, 0], sizes = [64, 128], strides = [1, 1]} : vector<96x256xf32> to vector<64x128xf32>
    %20 = vector.extract_strided_slice %18 {offsets = [16, 128], sizes = [64, 128], strides = [1, 1]} : vector<96x256xf32> to vector<64x128xf32>
    %21 = vector.extract_strided_slice %18 {offsets = [0, 0], sizes = [96, 128], strides = [1, 1]} : vector<96x256xf32> to vector<96x128xf32>
    %22 = arith.truncf %21 : vector<96x128xf32> to vector<96x128xbf16>
    %c0_14 = arith.constant 0 : index
    %c0_15 = arith.constant 0 : index
    %23 = vector.load %arg7[%c0_14, %c0_15] : memref<128x128xbf16, #tpu.memory_space<vmem>>, vector<128x128xbf16>
    %cst_16 = arith.constant dense<0.000000e+00> : vector<96x128xf32>
    %24 = tpu.matmul %22, %23, %cst_16 {dimension_numbers = #tpu.dot_dimension_numbers<[1], [0], [0], [1], [0, 0, 1, 1], [], []>} : vector<96x128xbf16>, vector<128x128xbf16>, vector<96x128xf32> -> vector<96x128xf32>
    %c0_17 = arith.constant 0 : index
    %c0_18 = arith.constant 0 : index
    %25 = vector.load %arg8[%c0_17, %c0_18] : memref<1x128xf32, #tpu.memory_space<vmem>>, vector<1x128xf32>
    %26 = vector.broadcast %25 : vector<1x128xf32> to vector<96x128xf32>
    %27 = arith.addf %24, %26 : vector<96x128xf32>
    %cst_19 = arith.constant 0.000000e+00 : f32
    %28 = vector.broadcast %cst_19 : f32 to vector<96x128xf32>
    %29 = arith.subf %28, %27 : vector<96x128xf32>
    %30 = math.exp %29 : vector<96x128xf32>
    %cst_20 = arith.constant 1.000000e+00 : f32
    %31 = vector.broadcast %cst_20 : f32 to vector<96x128xf32>
    %32 = arith.addf %31, %30 : vector<96x128xf32>
    %33 = tpu.reciprocal %32 {approx = true} : vector<96x128xf32> -> vector<96x128xf32>
    %34 = arith.mulf %27, %33 : vector<96x128xf32>
    %35 = tpu.iota {dimensions = array<i32: 0>} : vector<96x1xi32>
    %c16_i32 = arith.constant 16 : i32
    %36 = vector.broadcast %c16_i32 : i32 to vector<96x1xi32>
    %37 = arith.cmpi sge, %35, %36 : vector<96x1xi32>
    %c0_i32 = arith.constant 0 : i32
    %38 = arith.cmpi sgt, %arg1, %c0_i32 : i32
    %39 = vector.broadcast %38 : i1 to vector<96x1xi1>
    %40 = arith.ori %37, %39 : vector<96x1xi1>
    %c80_i32 = arith.constant 80 : i32
    %41 = vector.broadcast %c80_i32 : i32 to vector<96x1xi32>
    %42 = arith.cmpi slt, %35, %41 : vector<96x1xi32>
    %c3_i32 = arith.constant 3 : i32
    %43 = arith.cmpi slt, %arg1, %c3_i32 : i32
    %44 = vector.broadcast %43 : i1 to vector<96x1xi1>
    %45 = arith.ori %42, %44 : vector<96x1xi1>
    %46 = arith.andi %40, %45 : vector<96x1xi1>
    %cst_21 = arith.constant 0.000000e+00 : f32
    %47 = vector.shape_cast %46 : vector<96x1xi1> to vector<96x1xi1>
    %48 = vector.broadcast %47 : vector<96x1xi1> to vector<96x128xi1>
    %49 = vector.broadcast %cst_21 : f32 to vector<96x128xf32>
    %50 = arith.select %48, %34, %49 : vector<96x128xi1>, vector<96x128xf32>
    %c16_i32_22 = arith.constant 16 : i32
    %c0_i32_23 = arith.constant 0 : i32
    %51 = arith.cmpi eq, %c16_i32_22, %c0_i32_23 : i32
    %c1_i32 = arith.constant 1 : i32
    %52 = arith.select %51, %c1_i32, %c16_i32_22 : i32
    %53 = vector.broadcast %52 : i32 to vector<96x1xi32>
    %54 = arith.remsi %35, %53 : vector<96x1xi32>
    %c0_i32_24 = arith.constant 0 : i32
    %55 = vector.broadcast %c0_i32_24 : i32 to vector<96x1xi32>
    %56 = arith.cmpi ne, %54, %55 : vector<96x1xi32>
    %c0_i32_25 = arith.constant 0 : i32
    %57 = vector.broadcast %c0_i32_25 : i32 to vector<96x1xi32>
    %58 = arith.cmpi slt, %54, %57 : vector<96x1xi32>
    %c0_i32_26 = arith.constant 0 : i32
    %59 = arith.cmpi slt, %52, %c0_i32_26 : i32
    %60 = vector.broadcast %59 : i1 to vector<96x1xi1>
    %61 = vector.broadcast %60 : vector<96x1xi1> to vector<96x1xi1>
    %62 = arith.xori %58, %61 : vector<96x1xi1>
    %63 = arith.andi %62, %56 : vector<96x1xi1>
    %64 = vector.broadcast %52 : i32 to vector<96x1xi32>
    %65 = arith.addi %54, %64 : vector<96x1xi32>
    %66 = arith.select %63, %65, %54 : vector<96x1xi1>, vector<96x1xi32>
    %cst_27 = arith.constant 0.000000e+00 : f32
    %67 = vector.broadcast %cst_27 : f32 to vector<64x128xf32>
    %c0_i32_28 = arith.constant 0 : i32
    %68 = vector.broadcast %c0_i32_28 : i32 to vector<96x1xi32>
    %69 = arith.cmpi ne, %66, %68 : vector<96x1xi32>
    %c1_i32_29 = arith.constant 1 : i32
    %70 = tpu.dynamic_rotate %50 by %c1_i32_29 dim 0 : vector<96x128xf32>, i32 -> vector<96x128xf32>
    %cst_30 = arith.constant 0.000000e+00 : f32
    %71 = vector.shape_cast %69 : vector<96x1xi1> to vector<96x1xi1>
    %72 = vector.broadcast %71 : vector<96x1xi1> to vector<96x128xi1>
    %73 = vector.broadcast %cst_30 : f32 to vector<96x128xf32>
    %74 = arith.select %72, %70, %73 : vector<96x128xi1>, vector<96x128xf32>
    %75 = vector.extract_strided_slice %74 {offsets = [0, 0], sizes = [64, 128], strides = [1, 1]} : vector<96x128xf32> to vector<64x128xf32>
    %76 = vector.extract_strided_slice %74 {offsets = [16, 0], sizes = [64, 128], strides = [1, 1]} : vector<96x128xf32> to vector<64x128xf32>
    %77 = vector.extract_strided_slice %74 {offsets = [32, 0], sizes = [64, 128], strides = [1, 1]} : vector<96x128xf32> to vector<64x128xf32>
    %78 = tpu.concatenate %75, %76, %77 in 1 : vector<64x128xf32>, vector<64x128xf32>, vector<64x128xf32> -> vector<64x384xf32>
    %79 = arith.truncf %78 : vector<64x384xf32> to vector<64x384xbf16>
    %c0_31 = arith.constant 0 : index
    %c0_32 = arith.constant 0 : index
    %c0_33 = arith.constant 0 : index
    %80 = vector.load %arg9[%c0_31, %c0_32, %c0_33] : memref<3x384x128xbf16, #tpu.memory_space<vmem>>, vector<1x384x128xbf16>
    %81 = vector.shape_cast %80 : vector<1x384x128xbf16> to vector<384x128xbf16>
    %cst_34 = arith.constant dense<0.000000e+00> : vector<64x128xf32>
    %82 = tpu.matmul %79, %81, %cst_34 {dimension_numbers = #tpu.dot_dimension_numbers<[1], [0], [0], [1], [0, 0, 1, 1], [], []>} : vector<64x384xbf16>, vector<384x128xbf16>, vector<64x128xf32> -> vector<64x128xf32>
    %83 = arith.addf %67, %82 : vector<64x128xf32>
    %84 = vector.extract_strided_slice %50 {offsets = [0, 0], sizes = [64, 128], strides = [1, 1]} : vector<96x128xf32> to vector<64x128xf32>
    %85 = vector.extract_strided_slice %50 {offsets = [16, 0], sizes = [64, 128], strides = [1, 1]} : vector<96x128xf32> to vector<64x128xf32>
    %86 = vector.extract_strided_slice %50 {offsets = [32, 0], sizes = [64, 128], strides = [1, 1]} : vector<96x128xf32> to vector<64x128xf32>
    %87 = tpu.concatenate %84, %85, %86 in 1 : vector<64x128xf32>, vector<64x128xf32>, vector<64x128xf32> -> vector<64x384xf32>
    %88 = arith.truncf %87 : vector<64x384xf32> to vector<64x384xbf16>
    %c1 = arith.constant 1 : index
    %c0_35 = arith.constant 0 : index
    %c0_36 = arith.constant 0 : index
    %89 = vector.load %arg9[%c1, %c0_35, %c0_36] : memref<3x384x128xbf16, #tpu.memory_space<vmem>>, vector<1x384x128xbf16>
    %90 = vector.shape_cast %89 : vector<1x384x128xbf16> to vector<384x128xbf16>
    %cst_37 = arith.constant dense<0.000000e+00> : vector<64x128xf32>
    %91 = tpu.matmul %88, %90, %cst_37 {dimension_numbers = #tpu.dot_dimension_numbers<[1], [0], [0], [1], [0, 0, 1, 1], [], []>} : vector<64x384xbf16>, vector<384x128xbf16>, vector<64x128xf32> -> vector<64x128xf32>
    %92 = arith.addf %83, %91 : vector<64x128xf32>
    %c15_i32 = arith.constant 15 : i32
    %93 = vector.broadcast %c15_i32 : i32 to vector<96x1xi32>
    %94 = arith.cmpi ne, %66, %93 : vector<96x1xi32>
    %c95_i32 = arith.constant 95 : i32
    %95 = tpu.dynamic_rotate %50 by %c95_i32 dim 0 : vector<96x128xf32>, i32 -> vector<96x128xf32>
    %cst_38 = arith.constant 0.000000e+00 : f32
    %96 = vector.shape_cast %94 : vector<96x1xi1> to vector<96x1xi1>
    %97 = vector.broadcast %96 : vector<96x1xi1> to vector<96x128xi1>
    %98 = vector.broadcast %cst_38 : f32 to vector<96x128xf32>
    %99 = arith.select %97, %95, %98 : vector<96x128xi1>, vector<96x128xf32>
    %100 = vector.extract_strided_slice %99 {offsets = [0, 0], sizes = [64, 128], strides = [1, 1]} : vector<96x128xf32> to vector<64x128xf32>
    %101 = vector.extract_strided_slice %99 {offsets = [16, 0], sizes = [64, 128], strides = [1, 1]} : vector<96x128xf32> to vector<64x128xf32>
    %102 = vector.extract_strided_slice %99 {offsets = [32, 0], sizes = [64, 128], strides = [1, 1]} : vector<96x128xf32> to vector<64x128xf32>
    %103 = tpu.concatenate %100, %101, %102 in 1 : vector<64x128xf32>, vector<64x128xf32>, vector<64x128xf32> -> vector<64x384xf32>
    %104 = arith.truncf %103 : vector<64x384xf32> to vector<64x384xbf16>
    %c2 = arith.constant 2 : index
    %c0_39 = arith.constant 0 : index
    %c0_40 = arith.constant 0 : index
    %105 = vector.load %arg9[%c2, %c0_39, %c0_40] : memref<3x384x128xbf16, #tpu.memory_space<vmem>>, vector<1x384x128xbf16>
    %106 = vector.shape_cast %105 : vector<1x384x128xbf16> to vector<384x128xbf16>
    %cst_41 = arith.constant dense<0.000000e+00> : vector<64x128xf32>
    %107 = tpu.matmul %104, %106, %cst_41 {dimension_numbers = #tpu.dot_dimension_numbers<[1], [0], [0], [1], [0, 0, 1, 1], [], []>} : vector<64x384xbf16>, vector<384x128xbf16>, vector<64x128xf32> -> vector<64x128xf32>
    %108 = arith.addf %92, %107 : vector<64x128xf32>
    %c0_42 = arith.constant 0 : index
    %c0_43 = arith.constant 0 : index
    %109 = vector.load %arg10[%c0_42, %c0_43] : memref<1x128xf32, #tpu.memory_space<vmem>>, vector<1x128xf32>
    %110 = vector.broadcast %109 : vector<1x128xf32> to vector<64x128xf32>
    %111 = arith.addf %108, %110 : vector<64x128xf32>
    %cst_44 = arith.constant 0.000000e+00 : f32
    %112 = vector.broadcast %cst_44 : f32 to vector<64x128xf32>
    %113 = arith.subf %112, %111 : vector<64x128xf32>
    %114 = math.exp %113 : vector<64x128xf32>
    %cst_45 = arith.constant 1.000000e+00 : f32
    %115 = vector.broadcast %cst_45 : f32 to vector<64x128xf32>
    %116 = arith.addf %115, %114 : vector<64x128xf32>
    %117 = tpu.reciprocal %116 {approx = true} : vector<64x128xf32> -> vector<64x128xf32>
    %118 = arith.mulf %111, %117 : vector<64x128xf32>
    %119 = arith.addf %19, %118 : vector<64x128xf32>
    %120 = tpu.concatenate %119, %20 in 1 : vector<64x128xf32>, vector<64x128xf32> -> vector<64x256xf32>
    %121 = arith.truncf %120 : vector<64x256xf32> to vector<64x256xbf16>
    %c0_46 = arith.constant 0 : index
    %c0_47 = arith.constant 0 : index
    %122 = vector.load %arg11[%c0_46, %c0_47] : memref<256x128xbf16, #tpu.memory_space<vmem>>, vector<256x128xbf16>
    %cst_48 = arith.constant dense<0.000000e+00> : vector<64x128xf32>
    %123 = tpu.matmul %121, %122, %cst_48 {dimension_numbers = #tpu.dot_dimension_numbers<[1], [0], [0], [1], [0, 0, 1, 1], [], []>} : vector<64x256xbf16>, vector<256x128xbf16>, vector<64x128xf32> -> vector<64x128xf32>
    %c0_49 = arith.constant 0 : index
    %c0_50 = arith.constant 0 : index
    %124 = vector.load %arg12[%c0_49, %c0_50] : memref<1x128xf32, #tpu.memory_space<vmem>>, vector<1x128xf32>
    %125 = vector.broadcast %124 : vector<1x128xf32> to vector<64x128xf32>
    %126 = arith.addf %123, %125 : vector<64x128xf32>
    %cst_51 = arith.constant 0.000000e+00 : f32
    %127 = vector.broadcast %cst_51 : f32 to vector<64x128xf32>
    %128 = arith.subf %127, %126 : vector<64x128xf32>
    %129 = math.exp %128 : vector<64x128xf32>
    %cst_52 = arith.constant 1.000000e+00 : f32
    %130 = vector.broadcast %cst_52 : f32 to vector<64x128xf32>
    %131 = arith.addf %130, %129 : vector<64x128xf32>
    %132 = tpu.reciprocal %131 {approx = true} : vector<64x128xf32> -> vector<64x128xf32>
    %133 = arith.mulf %126, %132 : vector<64x128xf32>
    %c0_53 = arith.constant 0 : index
    %c0_54 = arith.constant 0 : index
    %c0_55 = arith.constant 0 : index
    %134 = vector.load %arg13[%c0_53, %c0_54, %c0_55] : memref<1x64x128xf32, #tpu.memory_space<vmem>>, vector<1x64x128xf32>
    %135 = vector.shape_cast %134 : vector<1x64x128xf32> to vector<64x128xf32>
    %136 = vector.shape_cast %133 : vector<64x128xf32> to vector<1x64x128xf32>
    tpu.vector_store %arg13[%c0_53, %c0_54, %c0_55], %136 {strides = array<i32>} : memref<1x64x128xf32, #tpu.memory_space<vmem>>, vector<1x64x128xf32>,
    return
  }
  func.func @transform_0(%arg0: i32, %arg1: i32) -> (i32, i32, i32) {
    %c0_i32 = arith.constant 0 : i32
    %c0_i32_0 = arith.constant 0 : i32
    return %arg0, %arg1, %c0_i32 : i32, i32, i32
  }
  func.func @transform_1(%arg0: i32, %arg1: i32) -> (i32, i32, i32) {
    %c0_i32 = arith.constant 0 : i32
    %c0_i32_0 = arith.constant 0 : i32
    return %arg0, %arg1, %c0_i32 : i32, i32, i32
  }
  func.func @transform_2(%arg0: i32, %arg1: i32) -> (i32, i32, i32) {
    %c0_i32 = arith.constant 0 : i32
    %c0_i32_0 = arith.constant 0 : i32
    return %arg0, %arg1, %c0_i32 : i32, i32, i32
  }
  func.func @transform_3(%arg0: i32, %arg1: i32) -> (i32, i32) {
    %c0_i32 = arith.constant 0 : i32
    %c0_i32_0 = arith.constant 0 : i32
    %c0_i32_1 = arith.constant 0 : i32
    return %c0_i32, %c0_i32_0 : i32, i32
  }
  func.func @transform_4(%arg0: i32, %arg1: i32) -> (i32, i32) {
    %c0_i32 = arith.constant 0 : i32
    %c0_i32_0 = arith.constant 0 : i32
    %c0_i32_1 = arith.constant 0 : i32
    return %c0_i32, %c0_i32_0 : i32, i32
  }
  func.func @transform_5(%arg0: i32, %arg1: i32) -> (i32, i32) {
    %c0_i32 = arith.constant 0 : i32
    %c0_i32_0 = arith.constant 0 : i32
    %c0_i32_1 = arith.constant 0 : i32
    return %c0_i32, %c0_i32_0 : i32, i32
  }
  func.func @transform_6(%arg0: i32, %arg1: i32) -> (i32, i32) {
    %c0_i32 = arith.constant 0 : i32
    %c0_i32_0 = arith.constant 0 : i32
    %c0_i32_1 = arith.constant 0 : i32
    return %c0_i32, %c0_i32_0 : i32, i32
  }
  func.func @transform_7(%arg0: i32, %arg1: i32) -> (i32, i32, i32) {
    %c0_i32 = arith.constant 0 : i32
    %c0_i32_0 = arith.constant 0 : i32
    %c0_i32_1 = arith.constant 0 : i32
    %c0_i32_2 = arith.constant 0 : i32
    return %c0_i32, %c0_i32_0, %c0_i32_1 : i32, i32, i32
  }
  func.func @transform_8(%arg0: i32, %arg1: i32) -> (i32, i32) {
    %c0_i32 = arith.constant 0 : i32
    %c0_i32_0 = arith.constant 0 : i32
    %c0_i32_1 = arith.constant 0 : i32
    return %c0_i32, %c0_i32_0 : i32, i32
  }
  func.func @transform_9(%arg0: i32, %arg1: i32) -> (i32, i32) {
    %c0_i32 = arith.constant 0 : i32
    %c0_i32_0 = arith.constant 0 : i32
    %c0_i32_1 = arith.constant 0 : i32
    return %c0_i32, %c0_i32_0 : i32, i32
  }
  func.func @transform_10(%arg0: i32, %arg1: i32) -> (i32, i32) {
    %c0_i32 = arith.constant 0 : i32
    %c0_i32_0 = arith.constant 0 : i32
    %c0_i32_1 = arith.constant 0 : i32
    return %c0_i32, %c0_i32_0 : i32, i32
  }
  func.func @transform_11(%arg0: i32, %arg1: i32) -> (i32, i32, i32) {
    %c0_i32 = arith.constant 0 : i32
    %c0_i32_0 = arith.constant 0 : i32
    return %arg0, %arg1, %c0_i32 : i32, i32, i32
  }
}

</mosaic_0001>

<llo_original>
// kernel: tpu_custom_call.1
$region0: #{tpu_custom_call.1}
  #allocation0 [shape = 'u32[]', space=smem, size = 0x4, offset = 0x4, fixed_abs, tag = 'smem constant byte address 0x4 - core index']
  #allocation1 [shape = 'u32[144,128]{1,0:T(1,128)}', space=vmem, size = 0x12000, scoped, tag = 'internal scratch']
  %s0 = inlined_call_operand.hbm [shape: f32[2,256,128], index: 0, kind: input, shape index: {}]
  %s1 = inlined_call_operand.hbm [shape: f32[2,64,128], index: 1, kind: input, shape index: {}]
  %s2 = inlined_call_operand.hbm [shape: f32[2,64,128], index: 2, kind: input, shape index: {}]
  %s3 = inlined_call_operand.hbm [shape: f32[128,256], index: 3, kind: input, shape index: {}]
  %s4 = inlined_call_operand.vmem [shape: f32[1,256], index: 4, kind: input, shape index: {}]
  %s5 = inlined_call_operand.hbm [shape: bf16[128,128], index: 5, kind: input, shape index: {}]
  %s6 = inlined_call_operand.vmem [shape: f32[1,128], index: 6, kind: input, shape index: {}]
  %s7 = inlined_call_operand.hbm [shape: bf16[3,384,128], index: 7, kind: input, shape index: {}]
  %s8 = inlined_call_operand.vmem [shape: f32[1,128], index: 8, kind: input, shape index: {}]
  %s9 = inlined_call_operand.hbm [shape: bf16[256,128], index: 9, kind: input, shape index: {}]
  %s10 = inlined_call_operand.vmem [shape: f32[1,128], index: 10, kind: input, shape index: {}]
  %s11 = inlined_call_operand.hbm [shape: f32[2,256,128], index: 11, kind: output, shape index: {}]
  %s12 = sld [smem:[#allocation0]]
  $region105: #{tpu_custom_call.1} parent=0
    _
  %s14 = ssub.s32 1, %s12
  %s15 = scalar_select 0, %s14, %s12
  $region1: #{tpu_custom_call.1} parent=0
    #allocation2 [shape = 'u8[65536]{0}', space=vmem, size = 0x10000, scoped, tag = 'input window, operand 0']
    #allocation3 [shape = 's32[2]{0}', space=sflag, size = 0x8, scoped, tag = 'scoped memory for tpu_custom_call.1']
    #allocation4 [shape = 's32[2]{0}', space=sflag, size = 0x8, scoped, tag = 'scoped memory for tpu_custom_call.1']
    #allocation5 [shape = 'u8[16384]{0}', space=vmem, size = 0x4000, scoped, tag = 'input window, operand 1']
    #allocation6 [shape = 's32[2]{0}', space=sflag, size = 0x8, scoped, tag = 'scoped memory for tpu_custom_call.1']
    #allocation7 [shape = 'u8[16384]{0}', space=vmem, size = 0x4000, scoped, tag = 'input window, operand 2']
    #allocation8 [shape = 'u8[131072]{0}', space=vmem, size = 0x20000, scoped, tag = 'input window, operand 3, single buffered']
    #allocation9 [shape = 's32[1]{0}', space=sflag, size = 0x4, scoped, tag = 'scoped memory for tpu_custom_call.1']
    #allocation10 [shape = 'u8[32768]{0}', space=vmem, size = 0x8000, scoped, tag = 'input window, operand 5, single buffered']
    #allocation11 [shape = 'u8[294912]{0}', space=vmem, size = 0x48000, scoped, tag = 'input window, operand 7, single buffered']
    #allocation12 [shape = 's32[1]{0}', space=sflag, size = 0x4, scoped, tag = 'scoped memory for tpu_custom_call.1']
    #allocation13 [shape = 'u8[65536]{0}', space=vmem, size = 0x10000, scoped, tag = 'input window, operand 9, single buffered']
    #allocation14 [shape = 'u8[65536]{0}', space=vmem, size = 0x10000, scoped, tag = 'output window, operand 0']
    %16 = vsyncpa [#allocation3], 0
    %s17 = scalar_lea.sflag [#allocation3], 1
    %18 = vsyncpa %s17, 0
    %19 = vsyncpa [#allocation6], 0
    %s20 = scalar_lea.sflag [#allocation6], 1
    %21 = vsyncpa %s20, 0
    %22 = vsyncpa [#allocation9], 0
    %23 = vsyncpa [#allocation12], 0
    %24 = vsyncpa [#allocation4], 0
    %s25 = scalar_lea.sflag [#allocation4], 1
    %26 = vsyncpa %s25, 0
    loop: start=0, step=1, limit=10
    $region2: #{tpu_custom_call.1} parent=1 // loop_pre_header
      _
    $region3: #{tpu_custom_call.1} parent=1 // loop_header
      %s28 = sphi 0, %s32
      %p29 = scmp.ge.s32.totalorder %s28, 10
      %s35 = sphi 0, %s47
      %s36 = sphi 0, %s43
      %s37 = sphi 0, %s35
      %s38 = sphi 0, %s36
      %s39 = sphi 0, %s37
      %s40 = sphi 0, %s38
      %s52 = sphi 0, %s54
      %s55 = sphi 0, %s52
      %s56 = sphi 0, %s55
      %s72 = sphi 0, %s56
      %s80 = sphi 0, %s82
      %s83 = sphi 0, %s80
      %s84 = sphi 0, %s83
      %s100 = sphi 0, %s84
      %s108 = sphi 0, %s110
      %s111 = sphi 0, %s108
      %s112 = sphi 0, %s111
      %s128 = sphi 0, %s112
      %s132 = sphi 0, %s132
      %s134 = sphi 0, %s132
      %s135 = sphi 0, %s134
      %s149 = sphi 0, %s135
      %s153 = sphi 0, %s153
      %s155 = sphi 0, %s153
      %s156 = sphi 0, %s155
      %s170 = sphi 0, %s156
      %s174 = sphi 0, %s174
      %s176 = sphi 0, %s174
      %s177 = sphi 0, %s176
      %s191 = sphi 0, %s177
      %s195 = sphi 0, %s195
      %s197 = sphi 0, %s195
      %s198 = sphi 0, %s197
      %s212 = sphi 0, %s198
      %s216 = sphi 0, %s216
      %s218 = sphi 0, %s216
      %s219 = sphi 0, %s218
      %s233 = sphi 0, %s219
      %s237 = sphi 0, %s237
      %s239 = sphi 0, %s237
      %s240 = sphi 0, %s239
      %s254 = sphi 0, %s240
      %s258 = sphi 0, %s258
      %s260 = sphi 0, %s258
      %s261 = sphi 0, %s260
      %s275 = sphi 0, %s261
      %s279 = sphi 0, %s279
      %s281 = sphi 0, %s279
      %s282 = sphi 0, %s281
      %s296 = sphi 0, %s282
      %s304 = sphi 0, %s306
      %s307 = sphi 0, %s304
      %s308 = sphi 0, %s307
      %s324 = sphi 0, %s308
    $region4: #{tpu_custom_call.1} parent=1 // loop_header_branch
      %31 = sbr.rel (%p29) target = $region8
    $region5: #{tpu_custom_call.1} parent=1 // loop_body
      %s33 = ssub.s32 %s28, 1
      %s34 = ssub.s32 %s28, 2
      %s41 = sadd.s32 1, %s36
      %p42 = scmp.ge.s32.totalorder %s41, 4
      %s43 = scalar_select %p42, 0, %s41
      %s44 = sadd.s32 1, %s35
      %s45 = scalar_select %p42, %s44, %s35
      %p46 = scmp.ge.s32.totalorder %s45, 2
      %s47 = scalar_select %p46, 0, %s45
      %s48 = ssub.s32 %s35, %s47
      %s49 = ssub.s32 %s36, %s43
      %s50 = sor.u32 %s48, %s49
      %p51 = scmp.eq.s32.totalorder %s50, 0
      %s53 = sadd.s32 %s52, 1
      %s54 = scalar_select %p51, %s52, %s53
      %p57 = pneg %p51
      %p58 = scmp.eq.s32.totalorder %s28, 7
      %p59 = por %p57, %p58
      %p60 = scmp.ne.s32.totalorder %s52, %s55
      %p61 = scmp.eq.s32.totalorder %s28, 0
      %p62 = por %p60, %p61
      %p63 = scmp.ne.s32.totalorder %s52, %s55
      %p64 = scmp.eq.s32.totalorder %s33, 7
      %p65 = por %p63, %p64
      %p66 = scmp.ne.s32.totalorder %s55, %s56
      %p67 = scmp.eq.s32.totalorder %s33, 0
      %p68 = por %p66, %p67
      %p69 = scmp.ne.s32.totalorder %s55, %s56
      %p70 = scmp.eq.s32.totalorder %s34, 7
      %p71 = por %p69, %p70
      %p73 = scmp.ne.s32.totalorder %s56, %s72
      %p74 = scmp.eq.s32.totalorder %s34, 0
      %p75 = por %p73, %p74
      %s76 = ssub.s32 %s35, %s47
      %s77 = ssub.s32 %s36, %s43
      %s78 = sor.u32 %s76, %s77
      %p79 = scmp.eq.s32.totalorder %s78, 0
      %s81 = sadd.s32 %s80, 1
      %s82 = scalar_select %p79, %s80, %s81
      %p85 = pneg %p79
      %p86 = scmp.eq.s32.totalorder %s28, 7
      %p87 = por %p85, %p86
      %p88 = scmp.ne.s32.totalorder %s80, %s83
      %p89 = scmp.eq.s32.totalorder %s28, 0
      %p90 = por %p88, %p89
      %p91 = scmp.ne.s32.totalorder %s80, %s83
      %p92 = scmp.eq.s32.totalorder %s33, 7
      %p93 = por %p91, %p92
      %p94 = scmp.ne.s32.totalorder %s83, %s84
      %p95 = scmp.eq.s32.totalorder %s33, 0
      %p96 = por %p94, %p95
      %p97 = scmp.ne.s32.totalorder %s83, %s84
      %p98 = scmp.eq.s32.totalorder %s34, 7
      %p99 = por %p97, %p98
      %p101 = scmp.ne.s32.totalorder %s84, %s100
      %p102 = scmp.eq.s32.totalorder %s34, 0
      %p103 = por %p101, %p102
      %s104 = ssub.s32 %s35, %s47
      %s105 = ssub.s32 %s36, %s43
      %s106 = sor.u32 %s104, %s105
      %p107 = scmp.eq.s32.totalorder %s106, 0
      %s109 = sadd.s32 %s108, 1
      %s110 = scalar_select %p107, %s108, %s109
      %p113 = pneg %p107
      %p114 = scmp.eq.s32.totalorder %s28, 7
      %p115 = por %p113, %p114
      %p116 = scmp.ne.s32.totalorder %s108, %s111
      %p117 = scmp.eq.s32.totalorder %s28, 0
      %p118 = por %p116, %p117
      %p119 = scmp.ne.s32.totalorder %s108, %s111
      %p120 = scmp.eq.s32.totalorder %s33, 7
      %p121 = por %p119, %p120
      %p122 = scmp.ne.s32.totalorder %s111, %s112
      %p123 = scmp.eq.s32.totalorder %s33, 0
      %p124 = por %p122, %p123
      %p125 = scmp.ne.s32.totalorder %s111, %s112
      %p126 = scmp.eq.s32.totalorder %s34, 7
      %p127 = por %p125, %p126
      %p129 = scmp.ne.s32.totalorder %s112, %s128
      %p130 = scmp.eq.s32.totalorder %s34, 0
      %p131 = por %p129, %p130
      %s133 = sadd.s32 %s132, 1
      %p136 = scmp.eq.s32.totalorder %s28, 7
      %p137 = scmp.ne.s32.totalorder %s132, %s134
      %p138 = scmp.eq.s32.totalorder %s28, 0
      %p139 = por %p137, %p138
      %p140 = scmp.ne.s32.totalorder %s132, %s134
      %p141 = scmp.eq.s32.totalorder %s33, 7
      %p142 = por %p140, %p141
      %p143 = scmp.ne.s32.totalorder %s134, %s135
      %p144 = scmp.eq.s32.totalorder %s33, 0
      %p145 = por %p143, %p144
      %p146 = scmp.ne.s32.totalorder %s134, %s135
      %p147 = scmp.eq.s32.totalorder %s34, 7
      %p148 = por %p146, %p147
      %p150 = scmp.ne.s32.totalorder %s135, %s149
      %p151 = scmp.eq.s32.totalorder %s34, 0
      %p152 = por %p150, %p151
      %s154 = sadd.s32 %s153, 1
      %p157 = scmp.eq.s32.totalorder %s28, 7
      %p158 = scmp.ne.s32.totalorder %s153, %s155
      %p159 = scmp.eq.s32.totalorder %s28, 0
      %p160 = por %p158, %p159
      %p161 = scmp.ne.s32.totalorder %s153, %s155
      %p162 = scmp.eq.s32.totalorder %s33, 7
      %p163 = por %p161, %p162
      %p164 = scmp.ne.s32.totalorder %s155, %s156
      %p165 = scmp.eq.s32.totalorder %s33, 0
      %p166 = por %p164, %p165
      %p167 = scmp.ne.s32.totalorder %s155, %s156
      %p168 = scmp.eq.s32.totalorder %s34, 7
      %p169 = por %p167, %p168
      %p171 = scmp.ne.s32.totalorder %s156, %s170
      %p172 = scmp.eq.s32.totalorder %s34, 0
      %p173 = por %p171, %p172
      %s175 = sadd.s32 %s174, 1
      %p178 = scmp.eq.s32.totalorder %s28, 7
      %p179 = scmp.ne.s32.totalorder %s174, %s176
      %p180 = scmp.eq.s32.totalorder %s28, 0
      %p181 = por %p179, %p180
      %p182 = scmp.ne.s32.totalorder %s174, %s176
      %p183 = scmp.eq.s32.totalorder %s33, 7
      %p184 = por %p182, %p183
      %p185 = scmp.ne.s32.totalorder %s176, %s177
      %p186 = scmp.eq.s32.totalorder %s33, 0
      %p187 = por %p185, %p186
      %p188 = scmp.ne.s32.totalorder %s176, %s177
      %p189 = scmp.eq.s32.totalorder %s34, 7
      %p190 = por %p188, %p189
      %p192 = scmp.ne.s32.totalorder %s177, %s191
      %p193 = scmp.eq.s32.totalorder %s34, 0
      %p194 = por %p192, %p193
      %s196 = sadd.s32 %s195, 1
      %p199 = scmp.eq.s32.totalorder %s28, 7
      %p200 = scmp.ne.s32.totalorder %s195, %s197
      %p201 = scmp.eq.s32.totalorder %s28, 0
      %p202 = por %p200, %p201
      %p203 = scmp.ne.s32.totalorder %s195, %s197
      %p204 = scmp.eq.s32.totalorder %s33, 7
      %p205 = por %p203, %p204
      %p206 = scmp.ne.s32.totalorder %s197, %s198
      %p207 = scmp.eq.s32.totalorder %s33, 0
      %p208 = por %p206, %p207
      %p209 = scmp.ne.s32.totalorder %s197, %s198
      %p210 = scmp.eq.s32.totalorder %s34, 7
      %p211 = por %p209, %p210
      %p213 = scmp.ne.s32.totalorder %s198, %s212
      %p214 = scmp.eq.s32.totalorder %s34, 0
      %p215 = por %p213, %p214
      %s217 = sadd.s32 %s216, 1
      %p220 = scmp.eq.s32.totalorder %s28, 7
      %p221 = scmp.ne.s32.totalorder %s216, %s218
      %p222 = scmp.eq.s32.totalorder %s28, 0
      %p223 = por %p221, %p222
      %p224 = scmp.ne.s32.totalorder %s216, %s218
      %p225 = scmp.eq.s32.totalorder %s33, 7
      %p226 = por %p224, %p225
      %p227 = scmp.ne.s32.totalorder %s218, %s219
      %p228 = scmp.eq.s32.totalorder %s33, 0
      %p229 = por %p227, %p228
      %p230 = scmp.ne.s32.totalorder %s218, %s219
      %p231 = scmp.eq.s32.totalorder %s34, 7
      %p232 = por %p230, %p231
      %p234 = scmp.ne.s32.totalorder %s219, %s233
      %p235 = scmp.eq.s32.totalorder %s34, 0
      %p236 = por %p234, %p235
      %s238 = sadd.s32 %s237, 1
      %p241 = scmp.eq.s32.totalorder %s28, 7
      %p242 = scmp.ne.s32.totalorder %s237, %s239
      %p243 = scmp.eq.s32.totalorder %s28, 0
      %p244 = por %p242, %p243
      %p245 = scmp.ne.s32.totalorder %s237, %s239
      %p246 = scmp.eq.s32.totalorder %s33, 7
      %p247 = por %p245, %p246
      %p248 = scmp.ne.s32.totalorder %s239, %s240
      %p249 = scmp.eq.s32.totalorder %s33, 0
      %p250 = por %p248, %p249
      %p251 = scmp.ne.s32.totalorder %s239, %s240
      %p252 = scmp.eq.s32.totalorder %s34, 7
      %p253 = por %p251, %p252
      %p255 = scmp.ne.s32.totalorder %s240, %s254
      %p256 = scmp.eq.s32.totalorder %s34, 0
      %p257 = por %p255, %p256
      %s259 = sadd.s32 %s258, 1
      %p262 = scmp.eq.s32.totalorder %s28, 7
      %p263 = scmp.ne.s32.totalorder %s258, %s260
      %p264 = scmp.eq.s32.totalorder %s28, 0
      %p265 = por %p263, %p264
      %p266 = scmp.ne.s32.totalorder %s258, %s260
      %p267 = scmp.eq.s32.totalorder %s33, 7
      %p268 = por %p266, %p267
      %p269 = scmp.ne.s32.totalorder %s260, %s261
      %p270 = scmp.eq.s32.totalorder %s33, 0
      %p271 = por %p269, %p270
      %p272 = scmp.ne.s32.totalorder %s260, %s261
      %p273 = scmp.eq.s32.totalorder %s34, 7
      %p274 = por %p272, %p273
      %p276 = scmp.ne.s32.totalorder %s261, %s275
      %p277 = scmp.eq.s32.totalorder %s34, 0
      %p278 = por %p276, %p277
      %s280 = sadd.s32 %s279, 1
      %p283 = scmp.eq.s32.totalorder %s28, 7
      %p284 = scmp.ne.s32.totalorder %s279, %s281
      %p285 = scmp.eq.s32.totalorder %s28, 0
      %p286 = por %p284, %p285
      %p287 = scmp.ne.s32.totalorder %s279, %s281
      %p288 = scmp.eq.s32.totalorder %s33, 7
      %p289 = por %p287, %p288
      %p290 = scmp.ne.s32.totalorder %s281, %s282
      %p291 = scmp.eq.s32.totalorder %s33, 0
      %p292 = por %p290, %p291
      %p293 = scmp.ne.s32.totalorder %s281, %s282
      %p294 = scmp.eq.s32.totalorder %s34, 7
      %p295 = por %p293, %p294
      %p297 = scmp.ne.s32.totalorder %s282, %s296
      %p298 = scmp.eq.s32.totalorder %s34, 0
      %p299 = por %p297, %p298
      %s300 = ssub.s32 %s35, %s47
      %s301 = ssub.s32 %s36, %s43
      %s302 = sor.u32 %s300, %s301
      %p303 = scmp.eq.s32.totalorder %s302, 0
      %s305 = sadd.s32 %s304, 1
      %s306 = scalar_select %p303, %s304, %s305
      %p309 = pneg %p303
      %p310 = scmp.eq.s32.totalorder %s28, 7
      %p311 = por %p309, %p310
      %p312 = scmp.ne.s32.totalorder %s304, %s307
      %p313 = scmp.eq.s32.totalorder %s28, 0
      %p314 = por %p312, %p313
      %p315 = scmp.ne.s32.totalorder %s304, %s307
      %p316 = scmp.eq.s32.totalorder %s33, 7
      %p317 = por %p315, %p316
      %p318 = scmp.ne.s32.totalorder %s307, %s308
      %p319 = scmp.eq.s32.totalorder %s33, 0
      %p320 = por %p318, %p319
      %p321 = scmp.ne.s32.totalorder %s307, %s308
      %p322 = scmp.eq.s32.totalorder %s34, 7
      %p323 = por %p321, %p322
      %p325 = scmp.ne.s32.totalorder %s308, %s324
      %p326 = scmp.eq.s32.totalorder %s34, 0
      %p327 = por %p325, %p326
      %p328 = scmp.le.s32.totalorder 1, %s28
      %p329 = scmp.lt.s32.totalorder %s28, 9
      %p330 = pnand %p328, %p329
      %p331 = pneg %p330
      // Predicated region
      $region9: #{tpu_custom_call.1} parent=5 // pred_check
        _
      $region10: #{tpu_custom_call.1} parent=5 // pred_check_branch
        %333 = sbr.rel (%p330) target = $region12
      $region11: #{tpu_custom_call.1} parent=5 // pred_region
        %s334 = ssub.s32 %s28, 1
        // Predicated region
        $region13: #{tpu_custom_call.1} parent=11 // pred_check
          %p335 = pneg %p145
        $region14: #{tpu_custom_call.1} parent=11 // pred_check_branch
          %337 = sbr.rel (%p335) target = $region16
        $region15: #{tpu_custom_call.1} parent=11 // pred_region
          %s339 = ssub.s32 4096, 4096
          %340 = vsyncadd [#allocation9], %s339
          %s341 = sshll.u32 [#allocation8], 4
          %s342 = int_to_ptr.vmem [resolvable:$true] %s341
          %347 = dma.hbm_to_vmem [thread:$0]  %s3, 4096, %s342, [#allocation9], 256, 256, 16
        $region16: #{tpu_custom_call.1} parent=11 // pred_fallthru
          _
        // Predicated region
        $region17: #{tpu_custom_call.1} parent=11 // pred_check
          %p348 = pneg %p166
        $region18: #{tpu_custom_call.1} parent=11 // pred_check_branch
          %350 = sbr.rel (%p348) target = $region20
        $region19: #{tpu_custom_call.1} parent=11 // pred_region
          _
        $region20: #{tpu_custom_call.1} parent=11 // pred_fallthru
          _
        // Predicated region
        $region21: #{tpu_custom_call.1} parent=11 // pred_check
          %p351 = pneg %p187
        $region22: #{tpu_custom_call.1} parent=11 // pred_check_branch
          %353 = sbr.rel (%p351) target = $region24
        $region23: #{tpu_custom_call.1} parent=11 // pred_region
          %s355 = ssub.s32 1024, 1024
          %356 = vsyncadd [#allocation9], %s355
          %s357 = sshll.u32 [#allocation10], 4
          %s358 = int_to_ptr.vmem [resolvable:$true] %s357
          %363 = dma.hbm_to_vmem [thread:$0]  %s5, 1024, %s358, [#allocation9], 64, 64, 4
        $region24: #{tpu_custom_call.1} parent=11 // pred_fallthru
          _
        // Predicated region
        $region25: #{tpu_custom_call.1} parent=11 // pred_check
          %p364 = pneg %p208
        $region26: #{tpu_custom_call.1} parent=11 // pred_check_branch
          %366 = sbr.rel (%p364) target = $region28
        $region27: #{tpu_custom_call.1} parent=11 // pred_region
          _
        $region28: #{tpu_custom_call.1} parent=11 // pred_fallthru
          _
        // Predicated region
        $region29: #{tpu_custom_call.1} parent=11 // pred_check
          %p367 = pneg %p229
        $region30: #{tpu_custom_call.1} parent=11 // pred_check_branch
          %369 = sbr.rel (%p367) target = $region32
        $region31: #{tpu_custom_call.1} parent=11 // pred_region
          %s371 = ssub.s32 9216, 9216
          %372 = vsyncadd [#allocation12], %s371
          %s373 = sshll.u32 [#allocation11], 4
          %s374 = int_to_ptr.vmem [resolvable:$true] %s373
          %379 = dma.hbm_to_vmem [thread:$0]  %s7, 9216, %s374, [#allocation12], 64, 64, 4
        $region32: #{tpu_custom_call.1} parent=11 // pred_fallthru
          _
        // Predicated region
        $region33: #{tpu_custom_call.1} parent=11 // pred_check
          %p380 = pneg %p250
        $region34: #{tpu_custom_call.1} parent=11 // pred_check_branch
          %382 = sbr.rel (%p380) target = $region36
        $region35: #{tpu_custom_call.1} parent=11 // pred_region
          _
        $region36: #{tpu_custom_call.1} parent=11 // pred_fallthru
          _
        // Predicated region
        $region37: #{tpu_custom_call.1} parent=11 // pred_check
          %p383 = pneg %p271
        $region38: #{tpu_custom_call.1} parent=11 // pred_check_branch
          %385 = sbr.rel (%p383) target = $region40
        $region39: #{tpu_custom_call.1} parent=11 // pred_region
          %s387 = ssub.s32 2048, 2048
          %388 = vsyncadd [#allocation12], %s387
          %s389 = sshll.u32 [#allocation13], 4
          %s390 = int_to_ptr.vmem [resolvable:$true] %s389
          %395 = dma.hbm_to_vmem [thread:$0]  %s9, 2048, %s390, [#allocation12], 64, 64, 4
        $region40: #{tpu_custom_call.1} parent=11 // pred_fallthru
          _
        // Predicated region
        $region41: #{tpu_custom_call.1} parent=11 // pred_check
          %p396 = pneg %p292
        $region42: #{tpu_custom_call.1} parent=11 // pred_check_branch
          %398 = sbr.rel (%p396) target = $region44
        $region43: #{tpu_custom_call.1} parent=11 // pred_region
          _
        $region44: #{tpu_custom_call.1} parent=11 // pred_fallthru
          _
      $region12: #{tpu_custom_call.1} parent=5 // pred_fallthru
        _
      %p399 = scmp.lt.s32.totalorder %s28, 8
      // Predicated region
      $region45: #{tpu_custom_call.1} parent=5 // pred_check
        %p400 = pneg %p399
      $region46: #{tpu_custom_call.1} parent=5 // pred_check_branch
        %402 = sbr.rel (%p400) target = $region48
      $region47: #{tpu_custom_call.1} parent=5 // pred_region
        // Predicated region
        $region49: #{tpu_custom_call.1} parent=47 // pred_check
          %p403 = pneg %p62
        $region50: #{tpu_custom_call.1} parent=47 // pred_check_branch
          %405 = sbr.rel (%p403) target = $region52
        $region51: #{tpu_custom_call.1} parent=47 // pred_region
          %s406 = sand.u32 %s52, 1
          %s407 = scalar_lea.sflag [#allocation3], %s406
          %s408 = sand.u32 %s52, 1
          %s409 = smul.addr %s408, 64
          %s410 = scalar_lea.vmem [#allocation2], %s409
          %s411 = smul.u32 8, %s36
          %s413 = ssub.s32 1024, 1024
          %414 = vsyncadd %s407, %s413
          %s415 = smul.addr %s35, 32
          %s416 = sadd.s32 %s411, %s415
          %s417 = smul.addr %s416, 128
          %s418 = scalar_lea.hbm %s0, %s417
          %s419 = sshll.u32 %s410, 4
          %s420 = int_to_ptr.vmem [resolvable:$true] %s419
          %425 = dma.hbm_to_vmem [thread:$0]  %s418, 1024, %s420, %s407, 128, 128, 8
        $region52: #{tpu_custom_call.1} parent=47 // pred_fallthru
          _
        // Predicated region
        $region53: #{tpu_custom_call.1} parent=47 // pred_check
          %p426 = pneg %p90
        $region54: #{tpu_custom_call.1} parent=47 // pred_check_branch
          %428 = sbr.rel (%p426) target = $region56
        $region55: #{tpu_custom_call.1} parent=47 // pred_region
          %s429 = sand.u32 %s28, 1
          %s430 = scalar_lea.sflag [#allocation6], %s429
          %s431 = sand.u32 %s80, 1
          %s432 = smul.addr %s431, 16
          %s433 = scalar_lea.vmem [#allocation5], %s432
          %s434 = smul.u32 2, %s36
          %s436 = ssub.s32 256, 256
          %437 = vsyncadd %s430, %s436
          %s438 = smul.addr %s35, 8
          %s439 = sadd.s32 %s434, %s438
          %s440 = smul.addr %s439, 128
          %s441 = scalar_lea.hbm %s1, %s440
          %s442 = sshll.u32 %s433, 4
          %s443 = int_to_ptr.vmem [resolvable:$true] %s442
          %448 = dma.hbm_to_vmem [thread:$0]  %s441, 256, %s443, %s430, 128, 128, 8
        $region56: #{tpu_custom_call.1} parent=47 // pred_fallthru
          _
        // Predicated region
        $region57: #{tpu_custom_call.1} parent=47 // pred_check
          %p449 = pneg %p118
        $region58: #{tpu_custom_call.1} parent=47 // pred_check_branch
          %451 = sbr.rel (%p449) target = $region60
        $region59: #{tpu_custom_call.1} parent=47 // pred_region
          %s452 = sand.u32 %s28, 1
          %s453 = scalar_lea.sflag [#allocation6], %s452
          %s454 = sand.u32 %s108, 1
          %s455 = smul.addr %s454, 16
          %s456 = scalar_lea.vmem [#allocation7], %s455
          %s457 = smul.u32 2, %s36
          %s459 = ssub.s32 256, 256
          %460 = vsyncadd %s453, %s459
          %s461 = smul.addr %s35, 8
          %s462 = sadd.s32 %s457, %s461
          %s463 = smul.addr %s462, 128
          %s464 = scalar_lea.hbm %s2, %s463
          %s465 = sshll.u32 %s456, 4
          %s466 = int_to_ptr.vmem [resolvable:$true] %s465
          %471 = dma.hbm_to_vmem [thread:$0]  %s464, 256, %s466, %s453, 128, 128, 8
        $region60: #{tpu_custom_call.1} parent=47 // pred_fallthru
          _
      $region48: #{tpu_custom_call.1} parent=5 // pred_fallthru
        _
      %p472 = scmp.le.s32.totalorder 1, %s28
      %p473 = scmp.lt.s32.totalorder %s28, 9
      %p474 = pnand %p472, %p473
      %p475 = pneg %p474
      // Predicated region
      $region61: #{tpu_custom_call.1} parent=5 // pred_check
        _
      $region62: #{tpu_custom_call.1} parent=5 // pred_check_branch
        %477 = sbr.rel (%p474) target = $region64
      $region63: #{tpu_custom_call.1} parent=5 // pred_region
        %s478 = ssub.s32 %s28, 1
        %s479 = sand.u32 %s55, 1
        %s480 = scalar_lea.sflag [#allocation3], %s479
        %s481 = sand.u32 %s55, 1
        %s482 = smul.addr %s481, 64
        %s483 = scalar_lea.vmem [#allocation2], %s482
        // Predicated region
        $region65: #{tpu_custom_call.1} parent=63 // pred_check
          %p484 = pneg %p68
        $region66: #{tpu_custom_call.1} parent=63 // pred_check_branch
          %486 = sbr.rel (%p484) target = $region68
        $region67: #{tpu_custom_call.1} parent=63 // pred_region
          %487 = dma.done %s480, 1024
        $region68: #{tpu_custom_call.1} parent=63 // pred_fallthru
          _
        %s488 = sand.u32 %s33, 1
        %s489 = scalar_lea.sflag [#allocation6], %s488
        %s490 = sand.u32 %s83, 1
        %s491 = smul.addr %s490, 16
        %s492 = scalar_lea.vmem [#allocation5], %s491
        // Predicated region
        $region69: #{tpu_custom_call.1} parent=63 // pred_check
          %p493 = pneg %p96
        $region70: #{tpu_custom_call.1} parent=63 // pred_check_branch
          %495 = sbr.rel (%p493) target = $region72
        $region71: #{tpu_custom_call.1} parent=63 // pred_region
          %496 = dma.done %s489, 256
        $region72: #{tpu_custom_call.1} parent=63 // pred_fallthru
          _
        %s497 = sand.u32 %s33, 1
        %s498 = scalar_lea.sflag [#allocation6], %s497
        %s499 = sand.u32 %s111, 1
        %s500 = smul.addr %s499, 16
        %s501 = scalar_lea.vmem [#allocation7], %s500
        // Predicated region
        $region73: #{tpu_custom_call.1} parent=63 // pred_check
          %p502 = pneg %p124
        $region74: #{tpu_custom_call.1} parent=63 // pred_check_branch
          %504 = sbr.rel (%p502) target = $region76
        $region75: #{tpu_custom_call.1} parent=63 // pred_region
          %505 = dma.done %s498, 256
        $region76: #{tpu_custom_call.1} parent=63 // pred_fallthru
          _
        // Predicated region
        $region77: #{tpu_custom_call.1} parent=63 // pred_check
          %p506 = pneg %p145
        $region78: #{tpu_custom_call.1} parent=63 // pred_check_branch
          %508 = sbr.rel (%p506) target = $region80
        $region79: #{tpu_custom_call.1} parent=63 // pred_region
          %509 = dma.done [#allocation9], 4096
        $region80: #{tpu_custom_call.1} parent=63 // pred_fallthru
          _
        // Predicated region
        $region81: #{tpu_custom_call.1} parent=63 // pred_check
          %p510 = pneg %p187
        $region82: #{tpu_custom_call.1} parent=63 // pred_check_branch
          %512 = sbr.rel (%p510) target = $region84
        $region83: #{tpu_custom_call.1} parent=63 // pred_region
          %513 = dma.done [#allocation9], 1024
        $region84: #{tpu_custom_call.1} parent=63 // pred_fallthru
          _
        // Predicated region
        $region85: #{tpu_custom_call.1} parent=63 // pred_check
          %p514 = pneg %p229
        $region86: #{tpu_custom_call.1} parent=63 // pred_check_branch
          %516 = sbr.rel (%p514) target = $region88
        $region87: #{tpu_custom_call.1} parent=63 // pred_region
          %517 = dma.done [#allocation12], 9216
        $region88: #{tpu_custom_call.1} parent=63 // pred_fallthru
          _
        // Predicated region
        $region89: #{tpu_custom_call.1} parent=63 // pred_check
          %p518 = pneg %p271
        $region90: #{tpu_custom_call.1} parent=63 // pred_check_branch
          %520 = sbr.rel (%p518) target = $region92
        $region91: #{tpu_custom_call.1} parent=63 // pred_region
          %521 = dma.done [#allocation12], 2048
        $region92: #{tpu_custom_call.1} parent=63 // pred_fallthru
          _
        %s522 = sand.u32 %s55, 1
        %s523 = scalar_lea.sflag [#allocation3], %s522
        %s524 = sand.u32 %s55, 1
        %s525 = smul.addr %s524, 64
        %s526 = scalar_lea.vmem [#allocation2], %s525
        %p527 = pneg %p68
        %p528 = pneg %p65
        %s529 = sand.u32 %s33, 1
        %s530 = scalar_lea.sflag [#allocation6], %s529
        %s531 = sand.u32 %s83, 1
        %s532 = smul.addr %s531, 16
        %s533 = scalar_lea.vmem [#allocation5], %s532
        %p534 = pneg %p96
        %p535 = pneg %p93
        %s536 = sand.u32 %s33, 1
        %s537 = scalar_lea.sflag [#allocation6], %s536
        %s538 = sand.u32 %s111, 1
        %s539 = smul.addr %s538, 16
        %s540 = scalar_lea.vmem [#allocation7], %s539
        %p541 = pneg %p124
        %p542 = pneg %p121
        %p543 = pneg %p145
        %p544 = pneg %p142
        %p545 = pneg %p166
        %p546 = pneg %p163
        %p547 = pneg %p187
        %p548 = pneg %p184
        %p549 = pneg %p208
        %p550 = pneg %p205
        %p551 = pneg %p229
        %p552 = pneg %p226
        %p553 = pneg %p250
        %p554 = pneg %p247
        %p555 = pneg %p271
        %p556 = pneg %p268
        %p557 = pneg %p292
        %p558 = pneg %p289
        %p559 = pneg %p320
        %p560 = pneg %p317
        %s561 = sand.u32 %s307, 1
        %s562 = scalar_lea.sflag [#allocation4], %s561
        %s563 = sand.u32 %s307, 1
        %s564 = smul.addr %s563, 64
        %s565 = scalar_lea.vmem [#allocation14], %s564
        %s566 = smul.u32 8, %s38
        %s567 = smul.u32 2, %s38
        %s568 = smul.u32 2, %s38
        %s569 = smul.u32 8, %s38
        %v571 = vld [vmem:[%s492] sm:$0xff]
        %v572 = vld [vmem:[%s492 + $0x8] sm:$0xff]
        %v573 = vld [vmem:[%s483] sm:$0xff]
        %v574 = vld [vmem:[%s483 + $0x8] sm:$0xff]
        %v575 = vld [vmem:[%s483 + $0x10] sm:$0xff]
        %v576 = vld [vmem:[%s483 + $0x18] sm:$0xff]
        %v577 = vld [vmem:[%s483 + $0x20] sm:$0xff]
        %v578 = vld [vmem:[%s483 + $0x28] sm:$0xff]
        %v579 = vld [vmem:[%s483 + $0x30] sm:$0xff]
        %v580 = vld [vmem:[%s483 + $0x38] sm:$0xff]
        %v581 = vld [vmem:[%s501] sm:$0xff]
        %v582 = vld [vmem:[%s501 + $0x8] sm:$0xff]
        %v583 = vld [vmem:[#allocation8] sm:$0xff]
        %v584 = vld [vmem:[#allocation8 + $0x8] sm:$0xff]
        %v585 = vld [vmem:[#allocation8 + $0x10] sm:$0xff]
        %v586 = vld [vmem:[#allocation8 + $0x18] sm:$0xff]
        %v587 = vld [vmem:[#allocation8 + $0x20] sm:$0xff]
        %v588 = vld [vmem:[#allocation8 + $0x28] sm:$0xff]
        %v589 = vld [vmem:[#allocation8 + $0x30] sm:$0xff]
        %v590 = vld [vmem:[#allocation8 + $0x38] sm:$0xff]
        %v591 = vld [vmem:[#allocation8 + $0x40] sm:$0xff]
        %v592 = vld [vmem:[#allocation8 + $0x48] sm:$0xff]
        %v593 = vld [vmem:[#allocation8 + $0x50] sm:$0xff]
        %v594 = vld [vmem:[#allocation8 + $0x58] sm:$0xff]
        %v595 = vld [vmem:[#allocation8 + $0x60] sm:$0xff]
        %v596 = vld [vmem:[#allocation8 + $0x68] sm:$0xff]
        %v597 = vld [vmem:[#allocation8 + $0x70] sm:$0xff]
        %v598 = vld [vmem:[#allocation8 + $0x78] sm:$0xff]
        %v599 = vld [vmem:[#allocation8 + $0x80] sm:$0xff]
        %v600 = vld [vmem:[#allocation8 + $0x88] sm:$0xff]
        %v601 = vld [vmem:[#allocation8 + $0x90] sm:$0xff]
        %v602 = vld [vmem:[#allocation8 + $0x98] sm:$0xff]
        %v603 = vld [vmem:[#allocation8 + $0xa0] sm:$0xff]
        %v604 = vld [vmem:[#allocation8 + $0xa8] sm:$0xff]
        %v605 = vld [vmem:[#allocation8 + $0xb0] sm:$0xff]
        %v606 = vld [vmem:[#allocation8 + $0xb8] sm:$0xff]
        %v607 = vld [vmem:[#allocation8 + $0xc0] sm:$0xff]
        %v608 = vld [vmem:[#allocation8 + $0xc8] sm:$0xff]
        %v609 = vld [vmem:[#allocation8 + $0xd0] sm:$0xff]
        %v610 = vld [vmem:[#allocation8 + $0xd8] sm:$0xff]
        %v611 = vld [vmem:[#allocation8 + $0xe0] sm:$0xff]
        %v612 = vld [vmem:[#allocation8 + $0xe8] sm:$0xff]
        %v613 = vld [vmem:[#allocation8 + $0xf0] sm:$0xff]
        %v614 = vld [vmem:[#allocation8 + $0xf8] sm:$0xff]
        %v615 = vld [vmem:[%s4] sm:$0x3]
        %v617 = vlaneseq
        %v618 = vshrl.u32 %v617, 7
        %v619 = vsub.s32 0, %v618
        %v620 = vrot.slane %v615, %v619
        %v621 = vlaneseq
        %v622 = vshrl.u32 %v621, 7
        %v623 = vsub.s32 1, %v622
        %v624 = vrot.slane %v615, %v623
        %627 = vmatprep.subr.mxu0 %v614
        %628 = vmatpush1.msra.mxu0 %v613
        %629 = vmatprep.subr.mxu0 %v612
        %630 = vmatpush1.msra.mxu0 %v611
        %631 = vmatprep.subr.mxu0 %v610
        %632 = vmatpush1.msra.mxu0 %v609
        %633 = vmatprep.subr.mxu0 %v608
        %634 = vmatpush1.msra.mxu0 %v607
        %635 = vmatprep.subr.mxu0 %v606
        %636 = vmatpush1.msra.mxu0 %v605
        %637 = vmatprep.subr.mxu0 %v604
        %638 = vmatpush1.msra.mxu0 %v603
        %639 = vmatprep.subr.mxu0 %v602
        %640 = vmatpush1.msra.mxu0 %v601
        %641 = vmatprep.subr.mxu0 %v600
        %642 = vmatpush1.msra.mxu0 %v599
        %643 = vmatprep.subr.mxu0 %v598
        %644 = vmatpush1.msra.mxu0 %v597
        %645 = vmatprep.subr.mxu0 %v596
        %646 = vmatpush1.msra.mxu0 %v595
        %647 = vmatprep.subr.mxu0 %v594
        %648 = vmatpush1.msra.mxu0 %v593
        %649 = vmatprep.subr.mxu0 %v592
        %650 = vmatpush1.msra.mxu0 %v591
        %651 = vmatprep.subr.mxu0 %v590
        %652 = vmatpush1.msra.mxu0 %v589
        %653 = vmatprep.subr.mxu0 %v588
        %654 = vmatpush1.msra.mxu0 %v587
        %655 = vmatprep.subr.mxu0 %v586
        %656 = vmatpush1.msra.mxu0 %v585
        %657 = vmatprep.subr.mxu0 %v584
        %658 = vmatpush1.msra.mxu0 %v583
        %659 = vmatprep.subr.mxu0 0.0
        %660 = vmatpush2.msra.mxu0 0.0
        %661 = vmatprep.subr.mxu0 0.0
        %662 = vmatpush2.msra.mxu0 0.0
        %663 = vmatprep.subr.mxu0 0.0
        %664 = vmatpush2.msra.mxu0 0.0
        %665 = vmatprep.subr.mxu0 0.0
        %666 = vmatpush2.msra.mxu0 0.0
        %667 = vmatprep.subr.mxu0 0.0
        %668 = vmatpush2.msra.mxu0 0.0
        %669 = vmatprep.subr.mxu0 0.0
        %670 = vmatpush2.msra.mxu0 0.0
        %671 = vmatprep.subr.mxu0 0.0
        %672 = vmatpush2.msra.mxu0 0.0
        %673 = vmatprep.subr.mxu0 0.0
        %674 = vmatpush2.msra.mxu0 0.0
        %675 = vmatprep.subr.mxu0 0.0
        %676 = vmatpush2.msra.mxu0 0.0
        %677 = vmatprep.subr.mxu0 0.0
        %678 = vmatpush2.msra.mxu0 0.0
        %679 = vmatprep.subr.mxu0 0.0
        %680 = vmatpush2.msra.mxu0 0.0
        %681 = vmatprep.subr.mxu0 0.0
        %682 = vmatpush2.msra.mxu0 0.0
        %683 = vmatprep.subr.mxu0 0.0
        %684 = vmatpush2.msra.mxu0 0.0
        %685 = vmatprep.subr.mxu0 0.0
        %686 = vmatpush2.msra.mxu0 0.0
        %687 = vmatprep.subr.mxu0 0.0
        %688 = vmatpush2.msra.mxu0 0.0
        %689 = vmatprep.subr.mxu0 0.0
        %690 = vmatpush2.msra.mxu0 0.0
        %691 = vmatprep.mubr.f32.mxu0 0.0
        %692 = vmatmul.mubr.f32.gmra.mxu0 %v571
        %v693 = vpop.f32.mrf.mxu0
        %v694 = vadd.f32 %v620, %v693
        %v695 = vpop.f32.mrf.mxu0
        %696 = vmatprep.mubr.f32.mxu0 0.0
        %697 = vmatmul.mubr.f32.gmra.mxu0 %v572
        %v698 = vpop.f32.mrf.mxu0
        %v699 = vadd.f32 %v620, %v698
        %v700 = vpop.f32.mrf.mxu0
        %701 = vmatprep.mubr.f32.mxu0 0.0
        %702 = vmatmul.mubr.f32.gmra.mxu0 %v573
        %v703 = vpop.f32.mrf.mxu0
        %v704 = vadd.f32 %v620, %v703
        %v705 = vpop.f32.mrf.mxu0
        %v706 = vadd.f32 %v624, %v705
        %707 = vmatprep.mubr.f32.mxu0 0.0
        %708 = vmatmul.mubr.f32.gmra.mxu0 %v574
        %v709 = vpop.f32.mrf.mxu0
        %v710 = vadd.f32 %v620, %v709
        %v711 = vpop.f32.mrf.mxu0
        %v712 = vadd.f32 %v624, %v711
        %713 = vmatprep.mubr.f32.mxu0 0.0
        %714 = vmatmul.mubr.f32.gmra.mxu0 %v575
        %v715 = vpop.f32.mrf.mxu0
        %v716 = vadd.f32 %v620, %v715
        %v717 = vpop.f32.mrf.mxu0
        %v718 = vadd.f32 %v624, %v717
        %719 = vmatprep.mubr.f32.mxu0 0.0
        %720 = vmatmul.mubr.f32.gmra.mxu0 %v576
        %v721 = vpop.f32.mrf.mxu0
        %v722 = vadd.f32 %v620, %v721
        %v723 = vpop.f32.mrf.mxu0
        %v724 = vadd.f32 %v624, %v723
        %725 = vmatprep.mubr.f32.mxu0 0.0
        %726 = vmatmul.mubr.f32.gmra.mxu0 %v577
        %v727 = vpop.f32.mrf.mxu0
        %v728 = vadd.f32 %v620, %v727
        %v729 = vpop.f32.mrf.mxu0
        %v730 = vadd.f32 %v624, %v729
        %731 = vmatprep.mubr.f32.mxu0 0.0
        %732 = vmatmul.mubr.f32.gmra.mxu0 %v578
        %v733 = vpop.f32.mrf.mxu0
        %v734 = vadd.f32 %v620, %v733
        %v735 = vpop.f32.mrf.mxu0
        %v736 = vadd.f32 %v624, %v735
        %737 = vmatprep.mubr.f32.mxu0 0.0
        %738 = vmatmul.mubr.f32.gmra.mxu0 %v579
        %v739 = vpop.f32.mrf.mxu0
        %v740 = vadd.f32 %v620, %v739
        %v741 = vpop.f32.mrf.mxu0
        %v742 = vadd.f32 %v624, %v741
        %743 = vmatprep.mubr.f32.mxu0 0.0
        %744 = vmatmul.mubr.f32.gmra.mxu0 %v580
        %v745 = vpop.f32.mrf.mxu0
        %v746 = vadd.f32 %v620, %v745
        %v747 = vpop.f32.mrf.mxu0
        %v748 = vadd.f32 %v624, %v747
        %749 = vmatprep.mubr.f32.mxu0 0.0
        %750 = vmatmul.mubr.f32.gmra.mxu0 %v581
        %v751 = vpop.f32.mrf.mxu0
        %v752 = vadd.f32 %v620, %v751
        %v753 = vpop.f32.mrf.mxu0
        %754 = vmatprep.mubr.f32.mxu0 0.0
        %755 = vmatmul.mubr.f32.gmra.mxu0 %v582
        %v756 = vpop.f32.mrf.mxu0
        %v757 = vadd.f32 %v620, %v756
        %v758 = vpop.f32.mrf.mxu0
        %759 = vdwg.mxu0
        %v760 = vsub.f32 0.0, %v694
        %v761 = vsub.f32 0.0, %v699
        %v762 = vsub.f32 0.0, %v704
        %v763 = vsub.f32 0.0, %v706
        %v764 = vsub.f32 0.0, %v710
        %v765 = vsub.f32 0.0, %v712
        %v766 = vsub.f32 0.0, %v716
        %v767 = vsub.f32 0.0, %v718
        %v768 = vsub.f32 0.0, %v722
        %v769 = vsub.f32 0.0, %v724
        %v770 = vsub.f32 0.0, %v728
        %v771 = vsub.f32 0.0, %v730
        %v772 = vsub.f32 0.0, %v734
        %v773 = vsub.f32 0.0, %v736
        %v774 = vsub.f32 0.0, %v740
        %v775 = vsub.f32 0.0, %v742
        %v776 = vsub.f32 0.0, %v746
        %v777 = vsub.f32 0.0, %v748
        %v778 = vsub.f32 0.0, %v752
        %v779 = vsub.f32 0.0, %v757
        %v780 = vmul.f32 %v760, 1.442695
        %v781 = vpow.pop %v780
        %v782 = vmul.f32 %v761, 1.442695
        %v783 = vpow.pop %v782
        %v784 = vmul.f32 %v762, 1.442695
        %v785 = vpow.pop %v784
        %v786 = vmul.f32 %v763, 1.442695
        %v787 = vpow.pop %v786
        %v788 = vmul.f32 %v764, 1.442695
        %v789 = vpow.pop %v788
        %v790 = vmul.f32 %v765, 1.442695
        %v791 = vpow.pop %v790
        %v792 = vmul.f32 %v766, 1.442695
        %v793 = vpow.pop %v792
        %v794 = vmul.f32 %v767, 1.442695
        %v795 = vpow.pop %v794
        %v796 = vmul.f32 %v768, 1.442695
        %v797 = vpow.pop %v796
        %v798 = vmul.f32 %v769, 1.442695
        %v799 = vpow.pop %v798
        %v800 = vmul.f32 %v770, 1.442695
        %v801 = vpow.pop %v800
        %v802 = vmul.f32 %v771, 1.442695
        %v803 = vpow.pop %v802
        %v804 = vmul.f32 %v772, 1.442695
        %v805 = vpow.pop %v804
        %v806 = vmul.f32 %v773, 1.442695
        %v807 = vpow.pop %v806
        %v808 = vmul.f32 %v774, 1.442695
        %v809 = vpow.pop %v808
        %v810 = vmul.f32 %v775, 1.442695
        %v811 = vpow.pop %v810
        %v812 = vmul.f32 %v776, 1.442695
        %v813 = vpow.pop %v812
        %v814 = vmul.f32 %v777, 1.442695
        %v815 = vpow.pop %v814
        %v816 = vmul.f32 %v778, 1.442695
        %v817 = vpow.pop %v816
        %v818 = vmul.f32 %v779, 1.442695
        %v819 = vpow.pop %v818
        %v820 = vadd.f32 %v781, 1.0
        %v821 = vadd.f32 %v783, 1.0
        %v822 = vadd.f32 %v785, 1.0
        %v823 = vadd.f32 %v787, 1.0
        %v824 = vadd.f32 %v789, 1.0
        %v825 = vadd.f32 %v791, 1.0
        %v826 = vadd.f32 %v793, 1.0
        %v827 = vadd.f32 %v795, 1.0
        %v828 = vadd.f32 %v797, 1.0
        %v829 = vadd.f32 %v799, 1.0
        %v830 = vadd.f32 %v801, 1.0
        %v831 = vadd.f32 %v803, 1.0
        %v832 = vadd.f32 %v805, 1.0
        %v833 = vadd.f32 %v807, 1.0
        %v834 = vadd.f32 %v809, 1.0
        %v835 = vadd.f32 %v811, 1.0
        %v836 = vadd.f32 %v813, 1.0
        %v837 = vadd.f32 %v815, 1.0
        %v838 = vadd.f32 %v817, 1.0
        %v839 = vadd.f32 %v819, 1.0
        %v840 = vrcp.pop %v820
        %v841 = vrcp.pop %v821
        %v842 = vrcp.pop %v822
        %v843 = vrcp.pop %v823
        %v844 = vrcp.pop %v824
        %v845 = vrcp.pop %v825
        %v846 = vrcp.pop %v826
        %v847 = vrcp.pop %v827
        %v848 = vrcp.pop %v828
        %v849 = vrcp.pop %v829
        %v850 = vrcp.pop %v830
        %v851 = vrcp.pop %v831
        %v852 = vrcp.pop %v832
        %v853 = vrcp.pop %v833
        %v854 = vrcp.pop %v834
        %v855 = vrcp.pop %v835
        %v856 = vrcp.pop %v836
        %v857 = vrcp.pop %v837
        %v858 = vrcp.pop %v838
        %v859 = vrcp.pop %v839
        %v860 = vmul.f32 %v694, %v840
        %v861 = vmul.f32 %v699, %v841
        %v862 = vmul.f32 %v704, %v842
        %v863 = vmul.f32 %v706, %v843
        %v864 = vmul.f32 %v710, %v844
        %v865 = vmul.f32 %v712, %v845
        %v866 = vmul.f32 %v716, %v846
        %v867 = vmul.f32 %v718, %v847
        %v868 = vmul.f32 %v722, %v848
        %v869 = vmul.f32 %v724, %v849
        %v870 = vmul.f32 %v728, %v850
        %v871 = vmul.f32 %v730, %v851
        %v872 = vmul.f32 %v734, %v852
        %v873 = vmul.f32 %v736, %v853
        %v874 = vmul.f32 %v740, %v854
        %v875 = vmul.f32 %v742, %v855
        %v876 = vmul.f32 %v746, %v856
        %v877 = vmul.f32 %v748, %v857
        %v878 = vmul.f32 %v752, %v858
        %v879 = vmul.f32 %v757, %v859
        %v880 = vpack.c.bf16 %v861, %v860
        %v881 = vpack.c.bf16 %v864, %v862
        %v882 = vpack.c.bf16 %v868, %v866
        %v883 = vpack.c.bf16 %v872, %v870
        %v884 = vpack.c.bf16 %v876, %v874
        %v885 = vpack.c.bf16 %v879, %v878
        %v886 = vld [vmem:[#allocation10] sm:$0xf]
        %v887 = vld [vmem:[#allocation10 + $0x4] sm:$0xf]
        %v888 = vld [vmem:[#allocation10 + $0x8] sm:$0xf]
        %v889 = vld [vmem:[#allocation10 + $0xc] sm:$0xf]
        %v890 = vld [vmem:[#allocation10 + $0x10] sm:$0xf]
        %v891 = vld [vmem:[#allocation10 + $0x14] sm:$0xf]
        %v892 = vld [vmem:[#allocation10 + $0x18] sm:$0xf]
        %v893 = vld [vmem:[#allocation10 + $0x1c] sm:$0xf]
        %v894 = vld [vmem:[#allocation10 + $0x20] sm:$0xf]
        %v895 = vld [vmem:[#allocation10 + $0x24] sm:$0xf]
        %v896 = vld [vmem:[#allocation10 + $0x28] sm:$0xf]
        %v897 = vld [vmem:[#allocation10 + $0x2c] sm:$0xf]
        %v898 = vld [vmem:[#allocation10 + $0x30] sm:$0xf]
        %v899 = vld [vmem:[#allocation10 + $0x34] sm:$0xf]
        %v900 = vld [vmem:[#allocation10 + $0x38] sm:$0xf]
        %v901 = vld [vmem:[#allocation10 + $0x3c] sm:$0xf]
        %v902 = vld [vmem:[%s6] sm:$0x1]
        %v904 = vlaneseq
        %v905 = vshrl.u32 %v904, 7
        %v906 = vsub.s32 0, %v905
        %v907 = vrot.slane %v902, %v906
        %v925 = vunpack.c.l.b16 %v886
        %v926 = vunpack.c.l.b16 %v887
        %v927 = vunpack.c.l.b16 %v888
        %v928 = vunpack.c.l.b16 %v889
        %v929 = vunpack.c.l.b16 %v890
        %v930 = vunpack.c.l.b16 %v891
        %v931 = vunpack.c.l.b16 %v892
        %v932 = vunpack.c.l.b16 %v893
        %v933 = vunpack.c.l.b16 %v894
        %v934 = vunpack.c.l.b16 %v895
        %v935 = vunpack.c.l.b16 %v896
        %v936 = vunpack.c.l.b16 %v897
        %v937 = vunpack.c.l.b16 %v898
        %v938 = vunpack.c.l.b16 %v899
        %v939 = vunpack.c.l.b16 %v900
        %v940 = vunpack.c.l.b16 %v901
        %v941 = vpack.c.b16 %v926, %v925
        %v942 = vpack.c.b16 %v928, %v927
        %v943 = vpack.c.b16 %v930, %v929
        %v944 = vpack.c.b16 %v932, %v931
        %v945 = vpack.c.b16 %v934, %v933
        %v946 = vpack.c.b16 %v936, %v935
        %v947 = vpack.c.b16 %v938, %v937
        %v948 = vpack.c.b16 %v940, %v939
        %957 = vmatprep.subr.bf16.mxu0 0
        %958 = vmatpush1.bf16.msra.mxu0 %v948
        %959 = vmatprep.subr.bf16.mxu0 0
        %960 = vmatpush1.bf16.msra.mxu0 %v947
        %961 = vmatprep.subr.bf16.mxu0 0
        %962 = vmatpush1.bf16.msra.mxu0 %v946
        %963 = vmatprep.subr.bf16.mxu0 0
        %964 = vmatpush1.bf16.msra.mxu0 %v945
        %965 = vmatprep.subr.bf16.mxu0 0
        %966 = vmatpush1.bf16.msra.mxu0 %v944
        %967 = vmatprep.subr.bf16.mxu0 0
        %968 = vmatpush1.bf16.msra.mxu0 %v943
        %969 = vmatprep.subr.bf16.mxu0 0
        %970 = vmatpush1.bf16.msra.mxu0 %v942
        %971 = vmatprep.subr.bf16.mxu0 0
        %972 = vmatpush1.bf16.msra.mxu0 %v941
        %973 = vmatprep.subr.bf16.mxu0 0
        %974 = vmatpush2.bf16.msra.mxu0 0
        %975 = vmatprep.subr.bf16.mxu0 0
        %976 = vmatpush2.bf16.msra.mxu0 0
        %977 = vmatprep.subr.bf16.mxu0 0
        %978 = vmatpush2.bf16.msra.mxu0 0
        %979 = vmatprep.subr.bf16.mxu0 0
        %980 = vmatpush2.bf16.msra.mxu0 0
        %981 = vmatprep.subr.bf16.mxu0 0
        %982 = vmatpush2.bf16.msra.mxu0 0
        %983 = vmatprep.subr.bf16.mxu0 0
        %984 = vmatpush2.bf16.msra.mxu0 0
        %985 = vmatprep.subr.bf16.mxu0 0
        %986 = vmatpush2.bf16.msra.mxu0 0
        %987 = vmatprep.subr.bf16.mxu0 0
        %988 = vmatpush2.bf16.msra.mxu0 0
        %989 = vmatprep.mubr.bf16.mxu0 0
        %990 = vmatmul.mubr.bf16.gmra.mxu0 %v880
        %v991 = vpop.f32.mrf.mxu0
        %v992 = vadd.f32 %v907, %v991
        %v993 = vpop.f32.mrf.mxu0
        %v994 = vpop.f32.mrf.mxu0
        %v995 = vadd.f32 %v907, %v994
        %v996 = vpop.f32.mrf.mxu0
        %997 = vmatprep.mubr.bf16.mxu0 0
        %998 = vmatmul.mubr.bf16.gmra.mxu0 %v881
        %v999 = vpop.f32.mrf.mxu0
        %v1000 = vadd.f32 %v907, %v999
        %v1001 = vpop.f32.mrf.mxu0
        %v1002 = vpop.f32.mrf.mxu0
        %v1003 = vadd.f32 %v907, %v1002
        %v1004 = vpop.f32.mrf.mxu0
        %1005 = vmatprep.mubr.bf16.mxu0 0
        %1006 = vmatmul.mubr.bf16.gmra.mxu0 %v882
        %v1007 = vpop.f32.mrf.mxu0
        %v1008 = vadd.f32 %v907, %v1007
        %v1009 = vpop.f32.mrf.mxu0
        %v1010 = vpop.f32.mrf.mxu0
        %v1011 = vadd.f32 %v907, %v1010
        %v1012 = vpop.f32.mrf.mxu0
        %1013 = vmatprep.mubr.bf16.mxu0 0
        %1014 = vmatmul.mubr.bf16.gmra.mxu0 %v883
        %v1015 = vpop.f32.mrf.mxu0
        %v1016 = vadd.f32 %v907, %v1015
        %v1017 = vpop.f32.mrf.mxu0
        %v1018 = vpop.f32.mrf.mxu0
        %v1019 = vadd.f32 %v907, %v1018
        %v1020 = vpop.f32.mrf.mxu0
        %1021 = vmatprep.mubr.bf16.mxu0 0
        %1022 = vmatmul.mubr.bf16.gmra.mxu0 %v884
        %v1023 = vpop.f32.mrf.mxu0
        %v1024 = vadd.f32 %v907, %v1023
        %v1025 = vpop.f32.mrf.mxu0
        %v1026 = vpop.f32.mrf.mxu0
        %v1027 = vadd.f32 %v907, %v1026
        %v1028 = vpop.f32.mrf.mxu0
        %1029 = vmatprep.mubr.bf16.mxu0 0
        %1030 = vmatmul.mubr.bf16.gmra.mxu0 %v885
        %v1031 = vpop.f32.mrf.mxu0
        %v1032 = vadd.f32 %v907, %v1031
        %v1033 = vpop.f32.mrf.mxu0
        %v1034 = vpop.f32.mrf.mxu0
        %v1035 = vadd.f32 %v907, %v1034
        %v1036 = vpop.f32.mrf.mxu0
        %1037 = vdwg.mxu0
        %v1038 = vsub.f32 0.0, %v992
        %v1039 = vsub.f32 0.0, %v995
        %v1040 = vsub.f32 0.0, %v1000
        %v1041 = vsub.f32 0.0, %v1003
        %v1042 = vsub.f32 0.0, %v1008
        %v1043 = vsub.f32 0.0, %v1011
        %v1044 = vsub.f32 0.0, %v1016
        %v1045 = vsub.f32 0.0, %v1019
        %v1046 = vsub.f32 0.0, %v1024
        %v1047 = vsub.f32 0.0, %v1027
        %v1048 = vsub.f32 0.0, %v1032
        %v1049 = vsub.f32 0.0, %v1035
        %v1050 = vmul.f32 %v1038, 1.442695
        %v1051 = vpow.pop %v1050
        %v1052 = vmul.f32 %v1039, 1.442695
        %v1053 = vpow.pop %v1052
        %v1054 = vmul.f32 %v1040, 1.442695
        %v1055 = vpow.pop %v1054
        %v1056 = vmul.f32 %v1041, 1.442695
        %v1057 = vpow.pop %v1056
        %v1058 = vmul.f32 %v1042, 1.442695
        %v1059 = vpow.pop %v1058
        %v1060 = vmul.f32 %v1043, 1.442695
        %v1061 = vpow.pop %v1060
        %v1062 = vmul.f32 %v1044, 1.442695
        %v1063 = vpow.pop %v1062
        %v1064 = vmul.f32 %v1045, 1.442695
        %v1065 = vpow.pop %v1064
        %v1066 = vmul.f32 %v1046, 1.442695
        %v1067 = vpow.pop %v1066
        %v1068 = vmul.f32 %v1047, 1.442695
        %v1069 = vpow.pop %v1068
        %v1070 = vmul.f32 %v1048, 1.442695
        %v1071 = vpow.pop %v1070
        %v1072 = vmul.f32 %v1049, 1.442695
        %v1073 = vpow.pop %v1072
        %v1074 = vadd.f32 %v1051, 1.0
        %v1075 = vadd.f32 %v1053, 1.0
        %v1076 = vadd.f32 %v1055, 1.0
        %v1077 = vadd.f32 %v1057, 1.0
        %v1078 = vadd.f32 %v1059, 1.0
        %v1079 = vadd.f32 %v1061, 1.0
        %v1080 = vadd.f32 %v1063, 1.0
        %v1081 = vadd.f32 %v1065, 1.0
        %v1082 = vadd.f32 %v1067, 1.0
        %v1083 = vadd.f32 %v1069, 1.0
        %v1084 = vadd.f32 %v1071, 1.0
        %v1085 = vadd.f32 %v1073, 1.0
        %v1086 = vrcp.pop %v1074
        %v1087 = vrcp.pop %v1075
        %v1088 = vrcp.pop %v1076
        %v1089 = vrcp.pop %v1077
        %v1090 = vrcp.pop %v1078
        %v1091 = vrcp.pop %v1079
        %v1092 = vrcp.pop %v1080
        %v1093 = vrcp.pop %v1081
        %v1094 = vrcp.pop %v1082
        %v1095 = vrcp.pop %v1083
        %v1096 = vrcp.pop %v1084
        %v1097 = vrcp.pop %v1085
        %v1098 = vmul.f32 %v992, %v1086
        %v1099 = vmul.f32 %v995, %v1087
        %v1100 = vmul.f32 %v1000, %v1088
        %v1101 = vmul.f32 %v1003, %v1089
        %v1102 = vmul.f32 %v1008, %v1090
        %v1103 = vmul.f32 %v1011, %v1091
        %v1104 = vmul.f32 %v1016, %v1092
        %v1105 = vmul.f32 %v1019, %v1093
        %v1106 = vmul.f32 %v1024, %v1094
        %v1107 = vmul.f32 %v1027, %v1095
        %v1108 = vmul.f32 %v1032, %v1096
        %v1109 = vmul.f32 %v1035, %v1097
        %v1110 = vlaneseq
        %v1111 = vshrl.u32 %v1110, 7
        %v1112 = vadd.s32 %v1111, 8
        %v1113 = vadd.s32 %v1111, 16
        %v1114 = vadd.s32 %v1111, 24
        %v1115 = vadd.s32 %v1111, 32
        %v1116 = vadd.s32 %v1111, 40
        %v1117 = vadd.s32 %v1111, 48
        %v1118 = vadd.s32 %v1111, 56
        %v1119 = vadd.s32 %v1111, 64
        %v1120 = vadd.s32 %v1111, 72
        %v1121 = vadd.s32 %v1111, 80
        %v1122 = vadd.s32 %v1111, 88
        %vm1123 = vcmp.ge.s32.totalorder %v1111, 16
        %vm1124 = vcmp.ge.s32.totalorder %v1112, 16
        %vm1125 = vcmp.ge.s32.totalorder %v1113, 16
        %vm1126 = vcmp.ge.s32.totalorder %v1114, 16
        %vm1127 = vcmp.ge.s32.totalorder %v1115, 16
        %vm1128 = vcmp.ge.s32.totalorder %v1116, 16
        %vm1129 = vcmp.ge.s32.totalorder %v1117, 16
        %vm1130 = vcmp.ge.s32.totalorder %v1118, 16
        %vm1131 = vcmp.ge.s32.totalorder %v1119, 16
        %vm1132 = vcmp.ge.s32.totalorder %v1120, 16
        %vm1133 = vcmp.ge.s32.totalorder %v1121, 16
        %vm1134 = vcmp.ge.s32.totalorder %v1122, 16
        %p1135 = scmp.gt.s32.totalorder %s38, 0
        %s1136 = scalar_select %p1135, 1, 0
        %v1137 = vstv %s1136
        %vm1138 = vcmp.eq.s32.totalorder %v1137, 1
        %vm1139 = vmor %vm1123, %vm1138
        %vm1140 = vmor %vm1124, %vm1138
        %vm1141 = vmor %vm1125, %vm1138
        %vm1142 = vmor %vm1126, %vm1138
        %vm1143 = vmor %vm1127, %vm1138
        %vm1144 = vmor %vm1128, %vm1138
        %vm1145 = vmor %vm1129, %vm1138
        %vm1146 = vmor %vm1130, %vm1138
        %vm1147 = vmor %vm1131, %vm1138
        %vm1148 = vmor %vm1132, %vm1138
        %vm1149 = vmor %vm1133, %vm1138
        %vm1150 = vmor %vm1134, %vm1138
        %vm1151 = vcmp.lt.s32.totalorder %v1111, 80
        %vm1152 = vcmp.lt.s32.totalorder %v1112, 80
        %vm1153 = vcmp.lt.s32.totalorder %v1113, 80
        %vm1154 = vcmp.lt.s32.totalorder %v1114, 80
        %vm1155 = vcmp.lt.s32.totalorder %v1115, 80
        %vm1156 = vcmp.lt.s32.totalorder %v1116, 80
        %vm1157 = vcmp.lt.s32.totalorder %v1117, 80
        %vm1158 = vcmp.lt.s32.totalorder %v1118, 80
        %vm1159 = vcmp.lt.s32.totalorder %v1119, 80
        %vm1160 = vcmp.lt.s32.totalorder %v1120, 80
        %vm1161 = vcmp.lt.s32.totalorder %v1121, 80
        %vm1162 = vcmp.lt.s32.totalorder %v1122, 80
        %p1163 = scmp.lt.s32.totalorder %s38, 3
        %s1164 = scalar_select %p1163, 1, 0
        %v1165 = vstv %s1164
        %vm1166 = vcmp.eq.s32.totalorder %v1165, 1
        %vm1167 = vmor %vm1151, %vm1166
        %vm1168 = vmor %vm1152, %vm1166
        %vm1169 = vmor %vm1153, %vm1166
        %vm1170 = vmor %vm1154, %vm1166
        %vm1171 = vmor %vm1155, %vm1166
        %vm1172 = vmor %vm1156, %vm1166
        %vm1173 = vmor %vm1157, %vm1166
        %vm1174 = vmor %vm1158, %vm1166
        %vm1175 = vmor %vm1159, %vm1166
        %vm1176 = vmor %vm1160, %vm1166
        %vm1177 = vmor %vm1161, %vm1166
        %vm1178 = vmor %vm1162, %vm1166
        %vm1179 = vmand %vm1139, %vm1167
        %vm1180 = vmand %vm1140, %vm1168
        %vm1181 = vmand %vm1141, %vm1169
        %vm1182 = vmand %vm1142, %vm1170
        %vm1183 = vmand %vm1143, %vm1171
        %vm1184 = vmand %vm1144, %vm1172
        %vm1185 = vmand %vm1145, %vm1173
        %vm1186 = vmand %vm1146, %vm1174
        %vm1187 = vmand %vm1147, %vm1175
        %vm1188 = vmand %vm1148, %vm1176
        %vm1189 = vmand %vm1149, %vm1177
        %vm1190 = vmand %vm1150, %vm1178
        %v1191 = vsel %vm1179, 1, 0
        %v1192 = vsel %vm1180, 1, 0
        %v1193 = vsel %vm1181, 1, 0
        %v1194 = vsel %vm1182, 1, 0
        %v1195 = vsel %vm1183, 1, 0
        %v1196 = vsel %vm1184, 1, 0
        %v1197 = vsel %vm1185, 1, 0
        %v1198 = vsel %vm1186, 1, 0
        %v1199 = vsel %vm1187, 1, 0
        %v1200 = vsel %vm1188, 1, 0
        %v1201 = vsel %vm1189, 1, 0
        %v1202 = vsel %vm1190, 1, 0
        %vm1203 = vcmp.eq.s32.totalorder %v1191, 1
        %vm1204 = vcmp.eq.s32.totalorder %v1192, 1
        %vm1205 = vcmp.eq.s32.totalorder %v1193, 1
        %vm1206 = vcmp.eq.s32.totalorder %v1194, 1
        %vm1207 = vcmp.eq.s32.totalorder %v1195, 1
        %vm1208 = vcmp.eq.s32.totalorder %v1196, 1
        %vm1209 = vcmp.eq.s32.totalorder %v1197, 1
        %vm1210 = vcmp.eq.s32.totalorder %v1198, 1
        %vm1211 = vcmp.eq.s32.totalorder %v1199, 1
        %vm1212 = vcmp.eq.s32.totalorder %v1200, 1
        %vm1213 = vcmp.eq.s32.totalorder %v1201, 1
        %vm1214 = vcmp.eq.s32.totalorder %v1202, 1
        %v1215 = vsel %vm1203, %v1098, 0.0
        %v1216 = vsel %vm1204, %v1099, 0.0
        %v1217 = vsel %vm1205, %v1100, 0.0
        %v1218 = vsel %vm1206, %v1101, 0.0
        %v1219 = vsel %vm1207, %v1102, 0.0
        %v1220 = vsel %vm1208, %v1103, 0.0
        %v1221 = vsel %vm1209, %v1104, 0.0
        %v1222 = vsel %vm1210, %v1105, 0.0
        %v1223 = vsel %vm1211, %v1106, 0.0
        %v1224 = vsel %vm1212, %v1107, 0.0
        %v1225 = vsel %vm1213, %v1108, 0.0
        %v1226 = vsel %vm1214, %v1109, 0.0
        %vm1227 = vcmp.lt.s32.totalorder %v1111, 0
        %v1228 = vsub.s32 0, %v1111
        %v1229 = vsel %vm1227, %v1228, %v1111
        %v1230 = vshrl.u32 %v1229, 4
        %v1231 = vand.u32 %v1229, 15
        %v1232 = vsub.s32 0, %v1231
        %v1233 = vsel %vm1227, %v1232, %v1231
        %vm1234 = vcmp.lt.s32.totalorder %v1112, 0
        %v1235 = vsub.s32 0, %v1112
        %v1236 = vsel %vm1234, %v1235, %v1112
        %v1237 = vshrl.u32 %v1236, 4
        %v1238 = vand.u32 %v1236, 15
        %v1239 = vsub.s32 0, %v1238
        %v1240 = vsel %vm1234, %v1239, %v1238
        %vm1241 = vcmp.lt.s32.totalorder %v1113, 0
        %v1242 = vsub.s32 0, %v1113
        %v1243 = vsel %vm1241, %v1242, %v1113
        %v1244 = vshrl.u32 %v1243, 4
        %v1245 = vand.u32 %v1243, 15
        %v1246 = vsub.s32 0, %v1245
        %v1247 = vsel %vm1241, %v1246, %v1245
        %vm1248 = vcmp.lt.s32.totalorder %v1114, 0
        %v1249 = vsub.s32 0, %v1114
        %v1250 = vsel %vm1248, %v1249, %v1114
        %v1251 = vshrl.u32 %v1250, 4
        %v1252 = vand.u32 %v1250, 15
        %v1253 = vsub.s32 0, %v1252
        %v1254 = vsel %vm1248, %v1253, %v1252
        %vm1255 = vcmp.lt.s32.totalorder %v1115, 0
        %v1256 = vsub.s32 0, %v1115
        %v1257 = vsel %vm1255, %v1256, %v1115
        %v1258 = vshrl.u32 %v1257, 4
        %v1259 = vand.u32 %v1257, 15
        %v1260 = vsub.s32 0, %v1259
        %v1261 = vsel %vm1255, %v1260, %v1259
        %vm1262 = vcmp.lt.s32.totalorder %v1116, 0
        %v1263 = vsub.s32 0, %v1116
        %v1264 = vsel %vm1262, %v1263, %v1116
        %v1265 = vshrl.u32 %v1264, 4
        %v1266 = vand.u32 %v1264, 15
        %v1267 = vsub.s32 0, %v1266
        %v1268 = vsel %vm1262, %v1267, %v1266
        %vm1269 = vcmp.lt.s32.totalorder %v1117, 0
        %v1270 = vsub.s32 0, %v1117
        %v1271 = vsel %vm1269, %v1270, %v1117
        %v1272 = vshrl.u32 %v1271, 4
        %v1273 = vand.u32 %v1271, 15
        %v1274 = vsub.s32 0, %v1273
        %v1275 = vsel %vm1269, %v1274, %v1273
        %vm1276 = vcmp.lt.s32.totalorder %v1118, 0
        %v1277 = vsub.s32 0, %v1118
        %v1278 = vsel %vm1276, %v1277, %v1118
        %v1279 = vshrl.u32 %v1278, 4
        %v1280 = vand.u32 %v1278, 15
        %v1281 = vsub.s32 0, %v1280
        %v1282 = vsel %vm1276, %v1281, %v1280
        %vm1283 = vcmp.lt.s32.totalorder %v1119, 0
        %v1284 = vsub.s32 0, %v1119
        %v1285 = vsel %vm1283, %v1284, %v1119
        %v1286 = vshrl.u32 %v1285, 4
        %v1287 = vand.u32 %v1285, 15
        %v1288 = vsub.s32 0, %v1287
        %v1289 = vsel %vm1283, %v1288, %v1287
        %vm1290 = vcmp.lt.s32.totalorder %v1120, 0
        %v1291 = vsub.s32 0, %v1120
        %v1292 = vsel %vm1290, %v1291, %v1120
        %v1293 = vshrl.u32 %v1292, 4
        %v1294 = vand.u32 %v1292, 15
        %v1295 = vsub.s32 0, %v1294
        %v1296 = vsel %vm1290, %v1295, %v1294
        %vm1297 = vcmp.lt.s32.totalorder %v1121, 0
        %v1298 = vsub.s32 0, %v1121
        %v1299 = vsel %vm1297, %v1298, %v1121
        %v1300 = vshrl.u32 %v1299, 4
        %v1301 = vand.u32 %v1299, 15
        %v1302 = vsub.s32 0, %v1301
        %v1303 = vsel %vm1297, %v1302, %v1301
        %vm1304 = vcmp.lt.s32.totalorder %v1122, 0
        %v1305 = vsub.s32 0, %v1122
        %v1306 = vsel %vm1304, %v1305, %v1122
        %v1307 = vshrl.u32 %v1306, 4
        %v1308 = vand.u32 %v1306, 15
        %v1309 = vsub.s32 0, %v1308
        %v1310 = vsel %vm1304, %v1309, %v1308
        %vm1311 = vcmp.ne.s32.totalorder %v1233, 0
        %vm1312 = vcmp.ne.s32.totalorder %v1240, 0
        %vm1313 = vcmp.ne.s32.totalorder %v1247, 0
        %vm1314 = vcmp.ne.s32.totalorder %v1254, 0
        %vm1315 = vcmp.ne.s32.totalorder %v1261, 0
        %vm1316 = vcmp.ne.s32.totalorder %v1268, 0
        %vm1317 = vcmp.ne.s32.totalorder %v1275, 0
        %vm1318 = vcmp.ne.s32.totalorder %v1282, 0
        %vm1319 = vcmp.ne.s32.totalorder %v1289, 0
        %vm1320 = vcmp.ne.s32.totalorder %v1296, 0
        %vm1321 = vcmp.ne.s32.totalorder %v1303, 0
        %vm1322 = vcmp.ne.s32.totalorder %v1310, 0
        %vm1323 = vcmp.lt.s32.totalorder %v1233, 0
        %vm1324 = vcmp.lt.s32.totalorder %v1240, 0
        %vm1325 = vcmp.lt.s32.totalorder %v1247, 0
        %vm1326 = vcmp.lt.s32.totalorder %v1254, 0
        %vm1327 = vcmp.lt.s32.totalorder %v1261, 0
        %vm1328 = vcmp.lt.s32.totalorder %v1268, 0
        %vm1329 = vcmp.lt.s32.totalorder %v1275, 0
        %vm1330 = vcmp.lt.s32.totalorder %v1282, 0
        %vm1331 = vcmp.lt.s32.totalorder %v1289, 0
        %vm1332 = vcmp.lt.s32.totalorder %v1296, 0
        %vm1333 = vcmp.lt.s32.totalorder %v1303, 0
        %vm1334 = vcmp.lt.s32.totalorder %v1310, 0
        %vm1335 = vmand %vm1323, %vm1311
        %vm1336 = vmand %vm1324, %vm1312
        %vm1337 = vmand %vm1325, %vm1313
        %vm1338 = vmand %vm1326, %vm1314
        %vm1339 = vmand %vm1327, %vm1315
        %vm1340 = vmand %vm1328, %vm1316
        %vm1341 = vmand %vm1329, %vm1317
        %vm1342 = vmand %vm1330, %vm1318
        %vm1343 = vmand %vm1331, %vm1319
        %vm1344 = vmand %vm1332, %vm1320
        %vm1345 = vmand %vm1333, %vm1321
        %vm1346 = vmand %vm1334, %vm1322
        %v1347 = vadd.s32 %v1233, 16
        %v1348 = vadd.s32 %v1240, 16
        %v1349 = vadd.s32 %v1247, 16
        %v1350 = vadd.s32 %v1254, 16
        %v1351 = vadd.s32 %v1261, 16
        %v1352 = vadd.s32 %v1268, 16
        %v1353 = vadd.s32 %v1275, 16
        %v1354 = vadd.s32 %v1282, 16
        %v1355 = vadd.s32 %v1289, 16
        %v1356 = vadd.s32 %v1296, 16
        %v1357 = vadd.s32 %v1303, 16
        %v1358 = vadd.s32 %v1310, 16
        %v1359 = vsel %vm1335, %v1347, %v1233
        %v1360 = vsel %vm1336, %v1348, %v1240
        %v1361 = vsel %vm1337, %v1349, %v1247
        %v1362 = vsel %vm1338, %v1350, %v1254
        %v1363 = vsel %vm1339, %v1351, %v1261
        %v1364 = vsel %vm1340, %v1352, %v1268
        %v1365 = vsel %vm1341, %v1353, %v1275
        %v1366 = vsel %vm1342, %v1354, %v1282
        %v1367 = vsel %vm1343, %v1355, %v1289
        %v1368 = vsel %vm1344, %v1356, %v1296
        %v1369 = vsel %vm1345, %v1357, %v1303
        %v1370 = vsel %vm1346, %v1358, %v1310
        %vm1371 = vcmp.ne.s32.totalorder %v1359, 0
        %vm1372 = vcmp.ne.s32.totalorder %v1360, 0
        %vm1373 = vcmp.ne.s32.totalorder %v1361, 0
        %vm1374 = vcmp.ne.s32.totalorder %v1362, 0
        %vm1375 = vcmp.ne.s32.totalorder %v1363, 0
        %vm1376 = vcmp.ne.s32.totalorder %v1364, 0
        %vm1377 = vcmp.ne.s32.totalorder %v1365, 0
        %vm1378 = vcmp.ne.s32.totalorder %v1366, 0
        %vm1379 = vcmp.ne.s32.totalorder %v1367, 0
        %vm1380 = vcmp.ne.s32.totalorder %v1368, 0
        %vm1381 = vcmp.ne.s32.totalorder %v1369, 0
        %vm1382 = vcmp.ne.s32.totalorder %v1370, 0
        %v1383 = vrot.slane %v1215, 7
        %v1384 = vrot.slane %v1216, 7
        %v1385 = vrot.slane %v1217, 7
        %v1386 = vrot.slane %v1218, 7
        %v1387 = vrot.slane %v1219, 7
        %v1388 = vrot.slane %v1220, 7
        %v1389 = vrot.slane %v1221, 7
        %v1390 = vrot.slane %v1222, 7
        %v1391 = vrot.slane %v1223, 7
        %v1392 = vrot.slane %v1224, 7
        %v1393 = vrot.slane %v1225, 7
        %v1394 = vrot.slane %v1226, 7
        %vm1395 = vcmp.lt.s32.totalorder %v1111, 1
        %v1396 = vsel %vm1395, %v1393, %v1394
        %v1397 = vsel %vm1395, %v1392, %v1393
        %v1398 = vsel %vm1395, %v1391, %v1392
        %v1399 = vsel %vm1395, %v1390, %v1391
        %v1400 = vsel %vm1395, %v1389, %v1390
        %v1401 = vsel %vm1395, %v1388, %v1389
        %v1402 = vsel %vm1395, %v1387, %v1388
        %v1403 = vsel %vm1395, %v1386, %v1387
        %v1404 = vsel %vm1395, %v1385, %v1386
        %v1405 = vsel %vm1395, %v1384, %v1385
        %v1406 = vsel %vm1395, %v1383, %v1384
        %v1407 = vsel %vm1395, %v1394, %v1383
        %v1408 = vsel %vm1371, 1, 0
        %v1409 = vsel %vm1372, 1, 0
        %v1410 = vsel %vm1373, 1, 0
        %v1411 = vsel %vm1374, 1, 0
        %v1412 = vsel %vm1375, 1, 0
        %v1413 = vsel %vm1376, 1, 0
        %v1414 = vsel %vm1377, 1, 0
        %v1415 = vsel %vm1378, 1, 0
        %v1416 = vsel %vm1379, 1, 0
        %v1417 = vsel %vm1380, 1, 0
        %v1418 = vsel %vm1381, 1, 0
        %v1419 = vsel %vm1382, 1, 0
        %vm1420 = vcmp.eq.s32.totalorder %v1408, 1
        %vm1421 = vcmp.eq.s32.totalorder %v1409, 1
        %vm1422 = vcmp.eq.s32.totalorder %v1410, 1
        %vm1423 = vcmp.eq.s32.totalorder %v1411, 1
        %vm1424 = vcmp.eq.s32.totalorder %v1412, 1
        %vm1425 = vcmp.eq.s32.totalorder %v1413, 1
        %vm1426 = vcmp.eq.s32.totalorder %v1414, 1
        %vm1427 = vcmp.eq.s32.totalorder %v1415, 1
        %vm1428 = vcmp.eq.s32.totalorder %v1416, 1
        %vm1429 = vcmp.eq.s32.totalorder %v1417, 1
        %vm1430 = vcmp.eq.s32.totalorder %v1418, 1
        %vm1431 = vcmp.eq.s32.totalorder %v1419, 1
        %v1432 = vsel %vm1420, %v1407, 0.0
        %v1433 = vsel %vm1421, %v1406, 0.0
        %v1434 = vsel %vm1422, %v1405, 0.0
        %v1435 = vsel %vm1423, %v1404, 0.0
        %v1436 = vsel %vm1424, %v1403, 0.0
        %v1437 = vsel %vm1425, %v1402, 0.0
        %v1438 = vsel %vm1426, %v1401, 0.0
        %v1439 = vsel %vm1427, %v1400, 0.0
        %v1440 = vsel %vm1428, %v1399, 0.0
        %v1441 = vsel %vm1429, %v1398, 0.0
        %v1442 = vsel %vm1430, %v1397, 0.0
        %v1443 = vsel %vm1431, %v1396, 0.0
        %v1444 = vpack.c.bf16 %v1433, %v1432
        %v1445 = vpack.c.bf16 %v1435, %v1434
        %v1446 = vpack.c.bf16 %v1437, %v1436
        %v1447 = vpack.c.bf16 %v1439, %v1438
        %v1448 = vpack.c.bf16 %v1441, %v1440
        %v1449 = vpack.c.bf16 %v1443, %v1442
        %v1450 = vld [vmem:[#allocation11] sm:$0xf]
        %v1451 = vld [vmem:[#allocation11 + $0x4] sm:$0xf]
        %v1452 = vld [vmem:[#allocation11 + $0x8] sm:$0xf]
        %v1453 = vld [vmem:[#allocation11 + $0xc] sm:$0xf]
        %v1454 = vld [vmem:[#allocation11 + $0x10] sm:$0xf]
        %v1455 = vld [vmem:[#allocation11 + $0x14] sm:$0xf]
        %v1456 = vld [vmem:[#allocation11 + $0x18] sm:$0xf]
        %v1457 = vld [vmem:[#allocation11 + $0x1c] sm:$0xf]
        %v1458 = vld [vmem:[#allocation11 + $0x20] sm:$0xf]
        %v1459 = vld [vmem:[#allocation11 + $0x24] sm:$0xf]
        %v1460 = vld [vmem:[#allocation11 + $0x28] sm:$0xf]
        %v1461 = vld [vmem:[#allocation11 + $0x2c] sm:$0xf]
        %v1462 = vld [vmem:[#allocation11 + $0x30] sm:$0xf]
        %v1463 = vld [vmem:[#allocation11 + $0x34] sm:$0xf]
        %v1464 = vld [vmem:[#allocation11 + $0x38] sm:$0xf]
        %v1465 = vld [vmem:[#allocation11 + $0x3c] sm:$0xf]
        %v1466 = vld [vmem:[#allocation11 + $0x40] sm:$0xf]
        %v1467 = vld [vmem:[#allocation11 + $0x44] sm:$0xf]
        %v1468 = vld [vmem:[#allocation11 + $0x48] sm:$0xf]
        %v1469 = vld [vmem:[#allocation11 + $0x4c] sm:$0xf]
        %v1470 = vld [vmem:[#allocation11 + $0x50] sm:$0xf]
        %v1471 = vld [vmem:[#allocation11 + $0x54] sm:$0xf]
        %v1472 = vld [vmem:[#allocation11 + $0x58] sm:$0xf]
        %v1473 = vld [vmem:[#allocation11 + $0x5c] sm:$0xf]
        %v1474 = vld [vmem:[#allocation11 + $0x60] sm:$0xf]
        %v1475 = vld [vmem:[#allocation11 + $0x64] sm:$0xf]
        %v1476 = vld [vmem:[#allocation11 + $0x68] sm:$0xf]
        %v1477 = vld [vmem:[#allocation11 + $0x6c] sm:$0xf]
        %v1478 = vld [vmem:[#allocation11 + $0x70] sm:$0xf]
        %v1479 = vld [vmem:[#allocation11 + $0x74] sm:$0xf]
        %v1480 = vld [vmem:[#allocation11 + $0x78] sm:$0xf]
        %v1481 = vld [vmem:[#allocation11 + $0x7c] sm:$0xf]
        %v1482 = vld [vmem:[#allocation11 + $0x80] sm:$0xf]
        %v1483 = vld [vmem:[#allocation11 + $0x84] sm:$0xf]
        %v1484 = vld [vmem:[#allocation11 + $0x88] sm:$0xf]
        %v1485 = vld [vmem:[#allocation11 + $0x8c] sm:$0xf]
        %v1486 = vld [vmem:[#allocation11 + $0x90] sm:$0xf]
        %v1487 = vld [vmem:[#allocation11 + $0x94] sm:$0xf]
        %v1488 = vld [vmem:[#allocation11 + $0x98] sm:$0xf]
        %v1489 = vld [vmem:[#allocation11 + $0x9c] sm:$0xf]
        %v1490 = vld [vmem:[#allocation11 + $0xa0] sm:$0xf]
        %v1491 = vld [vmem:[#allocation11 + $0xa4] sm:$0xf]
        %v1492 = vld [vmem:[#allocation11 + $0xa8] sm:$0xf]
        %v1493 = vld [vmem:[#allocation11 + $0xac] sm:$0xf]
        %v1494 = vld [vmem:[#allocation11 + $0xb0] sm:$0xf]
        %v1495 = vld [vmem:[#allocation11 + $0xb4] sm:$0xf]
        %v1496 = vld [vmem:[#allocation11 + $0xb8] sm:$0xf]
        %v1497 = vld [vmem:[#allocation11 + $0xbc] sm:$0xf]
        %v1498 = vpack.c.bf16 %v1216, %v1215
        %v1499 = vpack.c.bf16 %v1218, %v1217
        %v1500 = vpack.c.bf16 %v1220, %v1219
        %v1501 = vpack.c.bf16 %v1222, %v1221
        %v1502 = vpack.c.bf16 %v1224, %v1223
        %v1503 = vpack.c.bf16 %v1226, %v1225
        %s1504 = scalar_lea.vmem [#allocation11], 192
        %v1505 = vld [vmem:[%s1504] sm:$0xf]
        %v1506 = vld [vmem:[%s1504 + $0x4] sm:$0xf]
        %v1507 = vld [vmem:[%s1504 + $0x8] sm:$0xf]
        %v1508 = vld [vmem:[%s1504 + $0xc] sm:$0xf]
        %v1509 = vld [vmem:[%s1504 + $0x10] sm:$0xf]
        %v1510 = vld [vmem:[%s1504 + $0x14] sm:$0xf]
        %v1511 = vld [vmem:[%s1504 + $0x18] sm:$0xf]
        %v1512 = vld [vmem:[%s1504 + $0x1c] sm:$0xf]
        %v1513 = vld [vmem:[%s1504 + $0x20] sm:$0xf]
        %v1514 = vld [vmem:[%s1504 + $0x24] sm:$0xf]
        %v1515 = vld [vmem:[%s1504 + $0x28] sm:$0xf]
        %v1516 = vld [vmem:[%s1504 + $0x2c] sm:$0xf]
        %v1517 = vld [vmem:[%s1504 + $0x30] sm:$0xf]
        %v1518 = vld [vmem:[%s1504 + $0x34] sm:$0xf]
        %v1519 = vld [vmem:[%s1504 + $0x38] sm:$0xf]
        %v1520 = vld [vmem:[%s1504 + $0x3c] sm:$0xf]
        %v1521 = vld [vmem:[%s1504 + $0x40] sm:$0xf]
        %v1522 = vld [vmem:[%s1504 + $0x44] sm:$0xf]
        %v1523 = vld [vmem:[%s1504 + $0x48] sm:$0xf]
        %v1524 = vld [vmem:[%s1504 + $0x4c] sm:$0xf]
        %v1525 = vld [vmem:[%s1504 + $0x50] sm:$0xf]
        %v1526 = vld [vmem:[%s1504 + $0x54] sm:$0xf]
        %v1527 = vld [vmem:[%s1504 + $0x58] sm:$0xf]
        %v1528 = vld [vmem:[%s1504 + $0x5c] sm:$0xf]
        %v1529 = vld [vmem:[%s1504 + $0x60] sm:$0xf]
        %v1530 = vld [vmem:[%s1504 + $0x64] sm:$0xf]
        %v1531 = vld [vmem:[%s1504 + $0x68] sm:$0xf]
        %v1532 = vld [vmem:[%s1504 + $0x6c] sm:$0xf]
        %v1533 = vld [vmem:[%s1504 + $0x70] sm:$0xf]
        %v1534 = vld [vmem:[%s1504 + $0x74] sm:$0xf]
        %v1535 = vld [vmem:[%s1504 + $0x78] sm:$0xf]
        %v1536 = vld [vmem:[%s1504 + $0x7c] sm:$0xf]
        %v1537 = vld [vmem:[%s1504 + $0x80] sm:$0xf]
        %v1538 = vld [vmem:[%s1504 + $0x84] sm:$0xf]
        %v1539 = vld [vmem:[%s1504 + $0x88] sm:$0xf]
        %v1540 = vld [vmem:[%s1504 + $0x8c] sm:$0xf]
        %v1541 = vld [vmem:[%s1504 + $0x90] sm:$0xf]
        %v1542 = vld [vmem:[%s1504 + $0x94] sm:$0xf]
        %v1543 = vld [vmem:[%s1504 + $0x98] sm:$0xf]
        %v1544 = vld [vmem:[%s1504 + $0x9c] sm:$0xf]
        %v1545 = vld [vmem:[%s1504 + $0xa0] sm:$0xf]
        %v1546 = vld [vmem:[%s1504 + $0xa4] sm:$0xf]
        %v1547 = vld [vmem:[%s1504 + $0xa8] sm:$0xf]
        %v1548 = vld [vmem:[%s1504 + $0xac] sm:$0xf]
        %v1549 = vld [vmem:[%s1504 + $0xb0] sm:$0xf]
        %v1550 = vld [vmem:[%s1504 + $0xb4] sm:$0xf]
        %v1551 = vld [vmem:[%s1504 + $0xb8] sm:$0xf]
        %v1552 = vld [vmem:[%s1504 + $0xbc] sm:$0xf]
        %v1601 = vunpack.c.l.b16 %v1505
        %v1602 = vunpack.c.l.b16 %v1506
        %v1603 = vunpack.c.l.b16 %v1507
        %v1604 = vunpack.c.l.b16 %v1508
        %v1605 = vunpack.c.l.b16 %v1509
        %v1606 = vunpack.c.l.b16 %v1510
        %v1607 = vunpack.c.l.b16 %v1511
        %v1608 = vunpack.c.l.b16 %v1512
        %v1609 = vunpack.c.l.b16 %v1513
        %v1610 = vunpack.c.l.b16 %v1514
        %v1611 = vunpack.c.l.b16 %v1515
        %v1612 = vunpack.c.l.b16 %v1516
        %v1613 = vunpack.c.l.b16 %v1517
        %v1614 = vunpack.c.l.b16 %v1518
        %v1615 = vunpack.c.l.b16 %v1519
        %v1616 = vunpack.c.l.b16 %v1520
        %v1617 = vunpack.c.l.b16 %v1521
        %v1618 = vunpack.c.l.b16 %v1522
        %v1619 = vunpack.c.l.b16 %v1523
        %v1620 = vunpack.c.l.b16 %v1524
        %v1621 = vunpack.c.l.b16 %v1525
        %v1622 = vunpack.c.l.b16 %v1526
        %v1623 = vunpack.c.l.b16 %v1527
        %v1624 = vunpack.c.l.b16 %v1528
        %v1625 = vunpack.c.l.b16 %v1529
        %v1626 = vunpack.c.l.b16 %v1530
        %v1627 = vunpack.c.l.b16 %v1531
        %v1628 = vunpack.c.l.b16 %v1532
        %v1629 = vunpack.c.l.b16 %v1533
        %v1630 = vunpack.c.l.b16 %v1534
        %v1631 = vunpack.c.l.b16 %v1535
        %v1632 = vunpack.c.l.b16 %v1536
        %v1633 = vunpack.c.l.b16 %v1537
        %v1634 = vunpack.c.l.b16 %v1538
        %v1635 = vunpack.c.l.b16 %v1539
        %v1636 = vunpack.c.l.b16 %v1540
        %v1637 = vunpack.c.l.b16 %v1541
        %v1638 = vunpack.c.l.b16 %v1542
        %v1639 = vunpack.c.l.b16 %v1543
        %v1640 = vunpack.c.l.b16 %v1544
        %v1641 = vunpack.c.l.b16 %v1545
        %v1642 = vunpack.c.l.b16 %v1546
        %v1643 = vunpack.c.l.b16 %v1547
        %v1644 = vunpack.c.l.b16 %v1548
        %v1645 = vunpack.c.l.b16 %v1549
        %v1646 = vunpack.c.l.b16 %v1550
        %v1647 = vunpack.c.l.b16 %v1551
        %v1648 = vunpack.c.l.b16 %v1552
        %v1649 = vpack.c.b16 %v1602, %v1601
        %v1650 = vpack.c.b16 %v1604, %v1603
        %v1651 = vpack.c.b16 %v1606, %v1605
        %v1652 = vpack.c.b16 %v1608, %v1607
        %v1653 = vpack.c.b16 %v1610, %v1609
        %v1654 = vpack.c.b16 %v1612, %v1611
        %v1655 = vpack.c.b16 %v1614, %v1613
        %v1656 = vpack.c.b16 %v1616, %v1615
        %v1657 = vpack.c.b16 %v1618, %v1617
        %v1658 = vpack.c.b16 %v1620, %v1619
        %v1659 = vpack.c.b16 %v1622, %v1621
        %v1660 = vpack.c.b16 %v1624, %v1623
        %v1661 = vpack.c.b16 %v1626, %v1625
        %v1662 = vpack.c.b16 %v1628, %v1627
        %v1663 = vpack.c.b16 %v1630, %v1629
        %v1664 = vpack.c.b16 %v1632, %v1631
        %v1665 = vpack.c.b16 %v1634, %v1633
        %v1666 = vpack.c.b16 %v1636, %v1635
        %v1667 = vpack.c.b16 %v1638, %v1637
        %v1668 = vpack.c.b16 %v1640, %v1639
        %v1669 = vpack.c.b16 %v1642, %v1641
        %v1670 = vpack.c.b16 %v1644, %v1643
        %v1671 = vpack.c.b16 %v1646, %v1645
        %v1672 = vpack.c.b16 %v1648, %v1647
        %1697 = vmatprep.subr.bf16.mxu0 0
        %1698 = vmatpush1.bf16.msra.mxu0 %v1656
        %1699 = vmatprep.subr.bf16.mxu0 0
        %1700 = vmatpush1.bf16.msra.mxu0 %v1655
        %1701 = vmatprep.subr.bf16.mxu0 0
        %1702 = vmatpush1.bf16.msra.mxu0 %v1654
        %1703 = vmatprep.subr.bf16.mxu0 0
        %1704 = vmatpush1.bf16.msra.mxu0 %v1653
        %1705 = vmatprep.subr.bf16.mxu0 0
        %1706 = vmatpush1.bf16.msra.mxu0 %v1652
        %1707 = vmatprep.subr.bf16.mxu0 0
        %1708 = vmatpush1.bf16.msra.mxu0 %v1651
        %1709 = vmatprep.subr.bf16.mxu0 0
        %1710 = vmatpush1.bf16.msra.mxu0 %v1650
        %1711 = vmatprep.subr.bf16.mxu0 0
        %1712 = vmatpush1.bf16.msra.mxu0 %v1649
        %1713 = vmatprep.subr.bf16.mxu0 0
        %1714 = vmatpush2.bf16.msra.mxu0 %v1664
        %1715 = vmatprep.subr.bf16.mxu0 0
        %1716 = vmatpush2.bf16.msra.mxu0 %v1663
        %1717 = vmatprep.subr.bf16.mxu0 0
        %1718 = vmatpush2.bf16.msra.mxu0 %v1662
        %1719 = vmatprep.subr.bf16.mxu0 0
        %1720 = vmatpush2.bf16.msra.mxu0 %v1661
        %1721 = vmatprep.subr.bf16.mxu0 0
        %1722 = vmatpush2.bf16.msra.mxu0 %v1660
        %1723 = vmatprep.subr.bf16.mxu0 0
        %1724 = vmatpush2.bf16.msra.mxu0 %v1659
        %1725 = vmatprep.subr.bf16.mxu0 0
        %1726 = vmatpush2.bf16.msra.mxu0 %v1658
        %1727 = vmatprep.subr.bf16.mxu0 0
        %1728 = vmatpush2.bf16.msra.mxu0 %v1657
        %1729 = vmatprep.mubr.bf16.mxu0 %v1499
        %1730 = vmatmul.mubr.bf16.gmra.mxu0 %v1498
        %v1731 = vpop.f32.mrf.mxu0
        %v1732 = vadd.f32 0.0, %v1731
        %v1733 = vpop.f32.mrf.mxu0
        %v1734 = vpop.f32.mrf.mxu0
        %v1735 = vadd.f32 0.0, %v1734
        %v1736 = vpop.f32.mrf.mxu0
        %1737 = vmatprep.mubr.bf16.mxu0 %v1500
        %1738 = vmatmul.mubr.bf16.gmra.mxu0 %v1499
        %v1739 = vpop.f32.mrf.mxu0
        %v1740 = vadd.f32 0.0, %v1739
        %v1741 = vpop.f32.mrf.mxu0
        %v1742 = vpop.f32.mrf.mxu0
        %v1743 = vadd.f32 0.0, %v1742
        %v1744 = vpop.f32.mrf.mxu0
        %1745 = vmatprep.mubr.bf16.mxu0 %v1501
        %1746 = vmatmul.mubr.bf16.gmra.mxu0 %v1500
        %v1747 = vpop.f32.mrf.mxu0
        %v1748 = vadd.f32 0.0, %v1747
        %v1749 = vpop.f32.mrf.mxu0
        %v1750 = vpop.f32.mrf.mxu0
        %v1751 = vadd.f32 0.0, %v1750
        %v1752 = vpop.f32.mrf.mxu0
        %1753 = vmatprep.mubr.bf16.mxu0 %v1502
        %1754 = vmatmul.mubr.bf16.gmra.mxu0 %v1501
        %v1755 = vpop.f32.mrf.mxu0
        %v1756 = vadd.f32 0.0, %v1755
        %v1757 = vpop.f32.mrf.mxu0
        %v1758 = vpop.f32.mrf.mxu0
        %v1759 = vadd.f32 0.0, %v1758
        %v1760 = vpop.f32.mrf.mxu0
        %1761 = vdwg.mxu0
        %1762 = vmatprep.subr.bf16.mxu0 0
        %1763 = vmatpush1.bf16.msra.mxu0 %v1672
        %1764 = vmatprep.subr.bf16.mxu0 0
        %1765 = vmatpush1.bf16.msra.mxu0 %v1671
        %1766 = vmatprep.subr.bf16.mxu0 0
        %1767 = vmatpush1.bf16.msra.mxu0 %v1670
        %1768 = vmatprep.subr.bf16.mxu0 0
        %1769 = vmatpush1.bf16.msra.mxu0 %v1669
        %1770 = vmatprep.subr.bf16.mxu0 0
        %1771 = vmatpush1.bf16.msra.mxu0 %v1668
        %1772 = vmatprep.subr.bf16.mxu0 0
        %1773 = vmatpush1.bf16.msra.mxu0 %v1667
        %1774 = vmatprep.subr.bf16.mxu0 0
        %1775 = vmatpush1.bf16.msra.mxu0 %v1666
        %1776 = vmatprep.subr.bf16.mxu0 0
        %1777 = vmatpush1.bf16.msra.mxu0 %v1665
        %1778 = vmatprep.subr.bf16.mxu0 0
        %1779 = vmatpush2.bf16.msra.mxu0 0
        %1780 = vmatprep.subr.bf16.mxu0 0
        %1781 = vmatpush2.bf16.msra.mxu0 0
        %1782 = vmatprep.subr.bf16.mxu0 0
        %1783 = vmatpush2.bf16.msra.mxu0 0
        %1784 = vmatprep.subr.bf16.mxu0 0
        %1785 = vmatpush2.bf16.msra.mxu0 0
        %1786 = vmatprep.subr.bf16.mxu0 0
        %1787 = vmatpush2.bf16.msra.mxu0 0
        %1788 = vmatprep.subr.bf16.mxu0 0
        %1789 = vmatpush2.bf16.msra.mxu0 0
        %1790 = vmatprep.subr.bf16.mxu0 0
        %1791 = vmatpush2.bf16.msra.mxu0 0
        %1792 = vmatprep.subr.bf16.mxu0 0
        %1793 = vmatpush2.bf16.msra.mxu0 0
        %1794 = vmatprep.mubr.bf16.mxu0 0
        %1795 = vmatmul.mubr.bf16.gmra.mxu0 %v1500
        %v1796 = vpop.f32.mrf.mxu0
        %v1797 = vadd.f32 %v1732, %v1796
        %v1798 = vpop.f32.mrf.mxu0
        %v1799 = vpop.f32.mrf.mxu0
        %v1800 = vadd.f32 %v1735, %v1799
        %v1801 = vpop.f32.mrf.mxu0
        %1802 = vmatprep.mubr.bf16.mxu0 0
        %1803 = vmatmul.mubr.bf16.gmra.mxu0 %v1501
        %v1804 = vpop.f32.mrf.mxu0
        %v1805 = vadd.f32 %v1740, %v1804
        %v1806 = vpop.f32.mrf.mxu0
        %v1807 = vpop.f32.mrf.mxu0
        %v1808 = vadd.f32 %v1743, %v1807
        %v1809 = vpop.f32.mrf.mxu0
        %1810 = vmatprep.mubr.bf16.mxu0 0
        %1811 = vmatmul.mubr.bf16.gmra.mxu0 %v1502
        %v1812 = vpop.f32.mrf.mxu0
        %v1813 = vadd.f32 %v1748, %v1812
        %v1814 = vpop.f32.mrf.mxu0
        %v1815 = vpop.f32.mrf.mxu0
        %v1816 = vadd.f32 %v1751, %v1815
        %v1817 = vpop.f32.mrf.mxu0
        %1818 = vmatprep.mubr.bf16.mxu0 0
        %1819 = vmatmul.mubr.bf16.gmra.mxu0 %v1503
        %v1820 = vpop.f32.mrf.mxu0
        %v1821 = vadd.f32 %v1756, %v1820
        %v1822 = vpop.f32.mrf.mxu0
        %v1823 = vpop.f32.mrf.mxu0
        %v1824 = vadd.f32 %v1759, %v1823
        %v1825 = vpop.f32.mrf.mxu0
        %1826 = vdwg.mxu0
        %v1875 = vunpack.c.l.b16 %v1450
        %v1876 = vunpack.c.l.b16 %v1451
        %v1877 = vunpack.c.l.b16 %v1452
        %v1878 = vunpack.c.l.b16 %v1453
        %v1879 = vunpack.c.l.b16 %v1454
        %v1880 = vunpack.c.l.b16 %v1455
        %v1881 = vunpack.c.l.b16 %v1456
        %v1882 = vunpack.c.l.b16 %v1457
        %v1883 = vunpack.c.l.b16 %v1458
        %v1884 = vunpack.c.l.b16 %v1459
        %v1885 = vunpack.c.l.b16 %v1460
        %v1886 = vunpack.c.l.b16 %v1461
        %v1887 = vunpack.c.l.b16 %v1462
        %v1888 = vunpack.c.l.b16 %v1463
        %v1889 = vunpack.c.l.b16 %v1464
        %v1890 = vunpack.c.l.b16 %v1465
        %v1891 = vunpack.c.l.b16 %v1466
        %v1892 = vunpack.c.l.b16 %v1467
        %v1893 = vunpack.c.l.b16 %v1468
        %v1894 = vunpack.c.l.b16 %v1469
        %v1895 = vunpack.c.l.b16 %v1470
        %v1896 = vunpack.c.l.b16 %v1471
        %v1897 = vunpack.c.l.b16 %v1472
        %v1898 = vunpack.c.l.b16 %v1473
        %v1899 = vunpack.c.l.b16 %v1474
        %v1900 = vunpack.c.l.b16 %v1475
        %v1901 = vunpack.c.l.b16 %v1476
        %v1902 = vunpack.c.l.b16 %v1477
        %v1903 = vunpack.c.l.b16 %v1478
        %v1904 = vunpack.c.l.b16 %v1479
        %v1905 = vunpack.c.l.b16 %v1480
        %v1906 = vunpack.c.l.b16 %v1481
        %v1907 = vunpack.c.l.b16 %v1482
        %v1908 = vunpack.c.l.b16 %v1483
        %v1909 = vunpack.c.l.b16 %v1484
        %v1910 = vunpack.c.l.b16 %v1485
        %v1911 = vunpack.c.l.b16 %v1486
        %v1912 = vunpack.c.l.b16 %v1487
        %v1913 = vunpack.c.l.b16 %v1488
        %v1914 = vunpack.c.l.b16 %v1489
        %v1915 = vunpack.c.l.b16 %v1490
        %v1916 = vunpack.c.l.b16 %v1491
        %v1917 = vunpack.c.l.b16 %v1492
        %v1918 = vunpack.c.l.b16 %v1493
        %v1919 = vunpack.c.l.b16 %v1494
        %v1920 = vunpack.c.l.b16 %v1495
        %v1921 = vunpack.c.l.b16 %v1496
        %v1922 = vunpack.c.l.b16 %v1497
        %v1923 = vpack.c.b16 %v1876, %v1875
        %v1924 = vpack.c.b16 %v1878, %v1877
        %v1925 = vpack.c.b16 %v1880, %v1879
        %v1926 = vpack.c.b16 %v1882, %v1881
        %v1927 = vpack.c.b16 %v1884, %v1883
        %v1928 = vpack.c.b16 %v1886, %v1885
        %v1929 = vpack.c.b16 %v1888, %v1887
        %v1930 = vpack.c.b16 %v1890, %v1889
        %v1931 = vpack.c.b16 %v1892, %v1891
        %v1932 = vpack.c.b16 %v1894, %v1893
        %v1933 = vpack.c.b16 %v1896, %v1895
        %v1934 = vpack.c.b16 %v1898, %v1897
        %v1935 = vpack.c.b16 %v1900, %v1899
        %v1936 = vpack.c.b16 %v1902, %v1901
        %v1937 = vpack.c.b16 %v1904, %v1903
        %v1938 = vpack.c.b16 %v1906, %v1905
        %v1939 = vpack.c.b16 %v1908, %v1907
        %v1940 = vpack.c.b16 %v1910, %v1909
        %v1941 = vpack.c.b16 %v1912, %v1911
        %v1942 = vpack.c.b16 %v1914, %v1913
        %v1943 = vpack.c.b16 %v1916, %v1915
        %v1944 = vpack.c.b16 %v1918, %v1917
        %v1945 = vpack.c.b16 %v1920, %v1919
        %v1946 = vpack.c.b16 %v1922, %v1921
        %1971 = vmatprep.subr.bf16.mxu0 0
        %1972 = vmatpush1.bf16.msra.mxu0 %v1930
        %1973 = vmatprep.subr.bf16.mxu0 0
        %1974 = vmatpush1.bf16.msra.mxu0 %v1929
        %1975 = vmatprep.subr.bf16.mxu0 0
        %1976 = vmatpush1.bf16.msra.mxu0 %v1928
        %1977 = vmatprep.subr.bf16.mxu0 0
        %1978 = vmatpush1.bf16.msra.mxu0 %v1927
        %1979 = vmatprep.subr.bf16.mxu0 0
        %1980 = vmatpush1.bf16.msra.mxu0 %v1926
        %1981 = vmatprep.subr.bf16.mxu0 0
        %1982 = vmatpush1.bf16.msra.mxu0 %v1925
        %1983 = vmatprep.subr.bf16.mxu0 0
        %1984 = vmatpush1.bf16.msra.mxu0 %v1924
        %1985 = vmatprep.subr.bf16.mxu0 0
        %1986 = vmatpush1.bf16.msra.mxu0 %v1923
        %1987 = vmatprep.subr.bf16.mxu0 0
        %1988 = vmatpush2.bf16.msra.mxu0 %v1938
        %1989 = vmatprep.subr.bf16.mxu0 0
        %1990 = vmatpush2.bf16.msra.mxu0 %v1937
        %1991 = vmatprep.subr.bf16.mxu0 0
        %1992 = vmatpush2.bf16.msra.mxu0 %v1936
        %1993 = vmatprep.subr.bf16.mxu0 0
        %1994 = vmatpush2.bf16.msra.mxu0 %v1935
        %1995 = vmatprep.subr.bf16.mxu0 0
        %1996 = vmatpush2.bf16.msra.mxu0 %v1934
        %1997 = vmatprep.subr.bf16.mxu0 0
        %1998 = vmatpush2.bf16.msra.mxu0 %v1933
        %1999 = vmatprep.subr.bf16.mxu0 0
        %2000 = vmatpush2.bf16.msra.mxu0 %v1932
        %2001 = vmatprep.subr.bf16.mxu0 0
        %2002 = vmatpush2.bf16.msra.mxu0 %v1931
        %2003 = vmatprep.mubr.bf16.mxu0 %v1445
        %2004 = vmatmul.mubr.bf16.gmra.mxu0 %v1444
        %v2005 = vpop.f32.mrf.mxu0
        %v2006 = vadd.f32 %v1797, %v2005
        %v2007 = vpop.f32.mrf.mxu0
        %v2008 = vpop.f32.mrf.mxu0
        %v2009 = vadd.f32 %v1800, %v2008
        %v2010 = vpop.f32.mrf.mxu0
        %2011 = vmatprep.mubr.bf16.mxu0 %v1446
        %2012 = vmatmul.mubr.bf16.gmra.mxu0 %v1445
        %v2013 = vpop.f32.mrf.mxu0
        %v2014 = vadd.f32 %v1805, %v2013
        %v2015 = vpop.f32.mrf.mxu0
        %v2016 = vpop.f32.mrf.mxu0
        %v2017 = vadd.f32 %v1808, %v2016
        %v2018 = vpop.f32.mrf.mxu0
        %2019 = vmatprep.mubr.bf16.mxu0 %v1447
        %2020 = vmatmul.mubr.bf16.gmra.mxu0 %v1446
        %v2021 = vpop.f32.mrf.mxu0
        %v2022 = vadd.f32 %v1813, %v2021
        %v2023 = vpop.f32.mrf.mxu0
        %v2024 = vpop.f32.mrf.mxu0
        %v2025 = vadd.f32 %v1816, %v2024
        %v2026 = vpop.f32.mrf.mxu0
        %2027 = vmatprep.mubr.bf16.mxu0 %v1448
        %2028 = vmatmul.mubr.bf16.gmra.mxu0 %v1447
        %v2029 = vpop.f32.mrf.mxu0
        %v2030 = vadd.f32 %v1821, %v2029
        %v2031 = vpop.f32.mrf.mxu0
        %v2032 = vpop.f32.mrf.mxu0
        %v2033 = vadd.f32 %v1824, %v2032
        %v2034 = vpop.f32.mrf.mxu0
        %2035 = vdwg.mxu0
        %2036 = vmatprep.subr.bf16.mxu0 0
        %2037 = vmatpush1.bf16.msra.mxu0 %v1946
        %2038 = vmatprep.subr.bf16.mxu0 0
        %2039 = vmatpush1.bf16.msra.mxu0 %v1945
        %2040 = vmatprep.subr.bf16.mxu0 0
        %2041 = vmatpush1.bf16.msra.mxu0 %v1944
        %2042 = vmatprep.subr.bf16.mxu0 0
        %2043 = vmatpush1.bf16.msra.mxu0 %v1943
        %2044 = vmatprep.subr.bf16.mxu0 0
        %2045 = vmatpush1.bf16.msra.mxu0 %v1942
        %2046 = vmatprep.subr.bf16.mxu0 0
        %2047 = vmatpush1.bf16.msra.mxu0 %v1941
        %2048 = vmatprep.subr.bf16.mxu0 0
        %2049 = vmatpush1.bf16.msra.mxu0 %v1940
        %2050 = vmatprep.subr.bf16.mxu0 0
        %2051 = vmatpush1.bf16.msra.mxu0 %v1939
        %2052 = vmatprep.subr.bf16.mxu0 0
        %2053 = vmatpush2.bf16.msra.mxu0 0
        %2054 = vmatprep.subr.bf16.mxu0 0
        %2055 = vmatpush2.bf16.msra.mxu0 0
        %2056 = vmatprep.subr.bf16.mxu0 0
        %2057 = vmatpush2.bf16.msra.mxu0 0
        %2058 = vmatprep.subr.bf16.mxu0 0
        %2059 = vmatpush2.bf16.msra.mxu0 0
        %2060 = vmatprep.subr.bf16.mxu0 0
        %2061 = vmatpush2.bf16.msra.mxu0 0
        %2062 = vmatprep.subr.bf16.mxu0 0
        %2063 = vmatpush2.bf16.msra.mxu0 0
        %2064 = vmatprep.subr.bf16.mxu0 0
        %2065 = vmatpush2.bf16.msra.mxu0 0
        %2066 = vmatprep.subr.bf16.mxu0 0
        %2067 = vmatpush2.bf16.msra.mxu0 0
        %2068 = vmatprep.mubr.bf16.mxu0 0
        %2069 = vmatmul.mubr.bf16.gmra.mxu0 %v1446
        %v2070 = vpop.f32.mrf.mxu0
        %v2071 = vadd.f32 %v2006, %v2070
        %v2072 = vpop.f32.mrf.mxu0
        %v2073 = vpop.f32.mrf.mxu0
        %v2074 = vadd.f32 %v2009, %v2073
        %v2075 = vpop.f32.mrf.mxu0
        %2076 = vmatprep.mubr.bf16.mxu0 0
        %2077 = vmatmul.mubr.bf16.gmra.mxu0 %v1447
        %v2078 = vpop.f32.mrf.mxu0
        %v2079 = vadd.f32 %v2014, %v2078
        %v2080 = vpop.f32.mrf.mxu0
        %v2081 = vpop.f32.mrf.mxu0
        %v2082 = vadd.f32 %v2017, %v2081
        %v2083 = vpop.f32.mrf.mxu0
        %2084 = vmatprep.mubr.bf16.mxu0 0
        %2085 = vmatmul.mubr.bf16.gmra.mxu0 %v1448
        %v2086 = vpop.f32.mrf.mxu0
        %v2087 = vadd.f32 %v2022, %v2086
        %v2088 = vpop.f32.mrf.mxu0
        %v2089 = vpop.f32.mrf.mxu0
        %v2090 = vadd.f32 %v2025, %v2089
        %v2091 = vpop.f32.mrf.mxu0
        %2092 = vmatprep.mubr.bf16.mxu0 0
        %2093 = vmatmul.mubr.bf16.gmra.mxu0 %v1449
        %v2094 = vpop.f32.mrf.mxu0
        %v2095 = vadd.f32 %v2030, %v2094
        %v2096 = vpop.f32.mrf.mxu0
        %v2097 = vpop.f32.mrf.mxu0
        %v2098 = vadd.f32 %v2033, %v2097
        %v2099 = vpop.f32.mrf.mxu0
        %2100 = vdwg.mxu0
        %vm2101 = vcmp.ne.s32.totalorder %v1359, 15
        %vm2102 = vcmp.ne.s32.totalorder %v1360, 15
        %vm2103 = vcmp.ne.s32.totalorder %v1361, 15
        %vm2104 = vcmp.ne.s32.totalorder %v1362, 15
        %vm2105 = vcmp.ne.s32.totalorder %v1363, 15
        %vm2106 = vcmp.ne.s32.totalorder %v1364, 15
        %vm2107 = vcmp.ne.s32.totalorder %v1365, 15
        %vm2108 = vcmp.ne.s32.totalorder %v1366, 15
        %vm2109 = vcmp.ne.s32.totalorder %v1367, 15
        %vm2110 = vcmp.ne.s32.totalorder %v1368, 15
        %vm2111 = vcmp.ne.s32.totalorder %v1369, 15
        %vm2112 = vcmp.ne.s32.totalorder %v1370, 15
        %v2113 = vrot.slane %v1215, 1
        %v2114 = vrot.slane %v1216, 1
        %v2115 = vrot.slane %v1217, 1
        %v2116 = vrot.slane %v1218, 1
        %v2117 = vrot.slane %v1219, 1
        %v2118 = vrot.slane %v1220, 1
        %v2119 = vrot.slane %v1221, 1
        %v2120 = vrot.slane %v1222, 1
        %v2121 = vrot.slane %v1223, 1
        %v2122 = vrot.slane %v1224, 1
        %v2123 = vrot.slane %v1225, 1
        %v2124 = vrot.slane %v1226, 1
        %vm2125 = vcmp.lt.s32.totalorder %v1111, 7
        %v2126 = vsel %vm2125, %v2123, %v2124
        %v2127 = vsel %vm2125, %v2122, %v2123
        %v2128 = vsel %vm2125, %v2121, %v2122
        %v2129 = vsel %vm2125, %v2120, %v2121
        %v2130 = vsel %vm2125, %v2119, %v2120
        %v2131 = vsel %vm2125, %v2118, %v2119
        %v2132 = vsel %vm2125, %v2117, %v2118
        %v2133 = vsel %vm2125, %v2116, %v2117
        %v2134 = vsel %vm2125, %v2115, %v2116
        %v2135 = vsel %vm2125, %v2114, %v2115
        %v2136 = vsel %vm2125, %v2113, %v2114
        %v2137 = vsel %vm2125, %v2124, %v2113
        %v2138 = vsel %vm2101, 1, 0
        %v2139 = vsel %vm2102, 1, 0
        %v2140 = vsel %vm2103, 1, 0
        %v2141 = vsel %vm2104, 1, 0
        %v2142 = vsel %vm2105, 1, 0
        %v2143 = vsel %vm2106, 1, 0
        %v2144 = vsel %vm2107, 1, 0
        %v2145 = vsel %vm2108, 1, 0
        %v2146 = vsel %vm2109, 1, 0
        %v2147 = vsel %vm2110, 1, 0
        %v2148 = vsel %vm2111, 1, 0
        %v2149 = vsel %vm2112, 1, 0
        %vm2150 = vcmp.eq.s32.totalorder %v2138, 1
        %vm2151 = vcmp.eq.s32.totalorder %v2139, 1
        %vm2152 = vcmp.eq.s32.totalorder %v2140, 1
        %vm2153 = vcmp.eq.s32.totalorder %v2141, 1
        %vm2154 = vcmp.eq.s32.totalorder %v2142, 1
        %vm2155 = vcmp.eq.s32.totalorder %v2143, 1
        %vm2156 = vcmp.eq.s32.totalorder %v2144, 1
        %vm2157 = vcmp.eq.s32.totalorder %v2145, 1
        %vm2158 = vcmp.eq.s32.totalorder %v2146, 1
        %vm2159 = vcmp.eq.s32.totalorder %v2147, 1
        %vm2160 = vcmp.eq.s32.totalorder %v2148, 1
        %vm2161 = vcmp.eq.s32.totalorder %v2149, 1
        %v2162 = vsel %vm2150, %v2136, 0.0
        %v2163 = vsel %vm2151, %v2135, 0.0
        %v2164 = vsel %vm2152, %v2134, 0.0
        %v2165 = vsel %vm2153, %v2133, 0.0
        %v2166 = vsel %vm2154, %v2132, 0.0
        %v2167 = vsel %vm2155, %v2131, 0.0
        %v2168 = vsel %vm2156, %v2130, 0.0
        %v2169 = vsel %vm2157, %v2129, 0.0
        %v2170 = vsel %vm2158, %v2128, 0.0
        %v2171 = vsel %vm2159, %v2127, 0.0
        %v2172 = vsel %vm2160, %v2126, 0.0
        %v2173 = vsel %vm2161, %v2137, 0.0
        %v2174 = vpack.c.bf16 %v2163, %v2162
        %v2175 = vpack.c.bf16 %v2165, %v2164
        %v2176 = vpack.c.bf16 %v2167, %v2166
        %v2177 = vpack.c.bf16 %v2169, %v2168
        %v2178 = vpack.c.bf16 %v2171, %v2170
        %v2179 = vpack.c.bf16 %v2173, %v2172
        %s2180 = scalar_lea.vmem [#allocation11], 384
        %v2181 = vld [vmem:[%s2180] sm:$0xf]
        %v2182 = vld [vmem:[%s2180 + $0x4] sm:$0xf]
        %v2183 = vld [vmem:[%s2180 + $0x8] sm:$0xf]
        %v2184 = vld [vmem:[%s2180 + $0xc] sm:$0xf]
        %v2185 = vld [vmem:[%s2180 + $0x10] sm:$0xf]
        %v2186 = vld [vmem:[%s2180 + $0x14] sm:$0xf]
        %v2187 = vld [vmem:[%s2180 + $0x18] sm:$0xf]
        %v2188 = vld [vmem:[%s2180 + $0x1c] sm:$0xf]
        %v2189 = vld [vmem:[%s2180 + $0x20] sm:$0xf]
        %v2190 = vld [vmem:[%s2180 + $0x24] sm:$0xf]
        %v2191 = vld [vmem:[%s2180 + $0x28] sm:$0xf]
        %v2192 = vld [vmem:[%s2180 + $0x2c] sm:$0xf]
        %v2193 = vld [vmem:[%s2180 + $0x30] sm:$0xf]
        %v2194 = vld [vmem:[%s2180 + $0x34] sm:$0xf]
        %v2195 = vld [vmem:[%s2180 + $0x38] sm:$0xf]
        %v2196 = vld [vmem:[%s2180 + $0x3c] sm:$0xf]
        %v2197 = vld [vmem:[%s2180 + $0x40] sm:$0xf]
        %v2198 = vld [vmem:[%s2180 + $0x44] sm:$0xf]
        %v2199 = vld [vmem:[%s2180 + $0x48] sm:$0xf]
        %v2200 = vld [vmem:[%s2180 + $0x4c] sm:$0xf]
        %v2201 = vld [vmem:[%s2180 + $0x50] sm:$0xf]
        %v2202 = vld [vmem:[%s2180 + $0x54] sm:$0xf]
        %v2203 = vld [vmem:[%s2180 + $0x58] sm:$0xf]
        %v2204 = vld [vmem:[%s2180 + $0x5c] sm:$0xf]
        %v2205 = vld [vmem:[%s2180 + $0x60] sm:$0xf]
        %v2206 = vld [vmem:[%s2180 + $0x64] sm:$0xf]
        %v2207 = vld [vmem:[%s2180 + $0x68] sm:$0xf]
        %v2208 = vld [vmem:[%s2180 + $0x6c] sm:$0xf]
        %v2209 = vld [vmem:[%s2180 + $0x70] sm:$0xf]
        %v2210 = vld [vmem:[%s2180 + $0x74] sm:$0xf]
        %v2211 = vld [vmem:[%s2180 + $0x78] sm:$0xf]
        %v2212 = vld [vmem:[%s2180 + $0x7c] sm:$0xf]
        %v2213 = vld [vmem:[%s2180 + $0x80] sm:$0xf]
        %v2214 = vld [vmem:[%s2180 + $0x84] sm:$0xf]
        %v2215 = vld [vmem:[%s2180 + $0x88] sm:$0xf]
        %v2216 = vld [vmem:[%s2180 + $0x8c] sm:$0xf]
        %v2217 = vld [vmem:[%s2180 + $0x90] sm:$0xf]
        %v2218 = vld [vmem:[%s2180 + $0x94] sm:$0xf]
        %v2219 = vld [vmem:[%s2180 + $0x98] sm:$0xf]
        %v2220 = vld [vmem:[%s2180 + $0x9c] sm:$0xf]
        %v2221 = vld [vmem:[%s2180 + $0xa0] sm:$0xf]
        %v2222 = vld [vmem:[%s2180 + $0xa4] sm:$0xf]
        %v2223 = vld [vmem:[%s2180 + $0xa8] sm:$0xf]
        %v2224 = vld [vmem:[%s2180 + $0xac] sm:$0xf]
        %v2225 = vld [vmem:[%s2180 + $0xb0] sm:$0xf]
        %v2226 = vld [vmem:[%s2180 + $0xb4] sm:$0xf]
        %v2227 = vld [vmem:[%s2180 + $0xb8] sm:$0xf]
        %v2228 = vld [vmem:[%s2180 + $0xbc] sm:$0xf]
        %v2277 = vunpack.c.l.b16 %v2181
        %v2278 = vunpack.c.l.b16 %v2182
        %v2279 = vunpack.c.l.b16 %v2183
        %v2280 = vunpack.c.l.b16 %v2184
        %v2281 = vunpack.c.l.b16 %v2185
        %v2282 = vunpack.c.l.b16 %v2186
        %v2283 = vunpack.c.l.b16 %v2187
        %v2284 = vunpack.c.l.b16 %v2188
        %v2285 = vunpack.c.l.b16 %v2189
        %v2286 = vunpack.c.l.b16 %v2190
        %v2287 = vunpack.c.l.b16 %v2191
        %v2288 = vunpack.c.l.b16 %v2192
        %v2289 = vunpack.c.l.b16 %v2193
        %v2290 = vunpack.c.l.b16 %v2194
        %v2291 = vunpack.c.l.b16 %v2195
        %v2292 = vunpack.c.l.b16 %v2196
        %v2293 = vunpack.c.l.b16 %v2197
        %v2294 = vunpack.c.l.b16 %v2198
        %v2295 = vunpack.c.l.b16 %v2199
        %v2296 = vunpack.c.l.b16 %v2200
        %v2297 = vunpack.c.l.b16 %v2201
        %v2298 = vunpack.c.l.b16 %v2202
        %v2299 = vunpack.c.l.b16 %v2203
        %v2300 = vunpack.c.l.b16 %v2204
        %v2301 = vunpack.c.l.b16 %v2205
        %v2302 = vunpack.c.l.b16 %v2206
        %v2303 = vunpack.c.l.b16 %v2207
        %v2304 = vunpack.c.l.b16 %v2208
        %v2305 = vunpack.c.l.b16 %v2209
        %v2306 = vunpack.c.l.b16 %v2210
        %v2307 = vunpack.c.l.b16 %v2211
        %v2308 = vunpack.c.l.b16 %v2212
        %v2309 = vunpack.c.l.b16 %v2213
        %v2310 = vunpack.c.l.b16 %v2214
        %v2311 = vunpack.c.l.b16 %v2215
        %v2312 = vunpack.c.l.b16 %v2216
        %v2313 = vunpack.c.l.b16 %v2217
        %v2314 = vunpack.c.l.b16 %v2218
        %v2315 = vunpack.c.l.b16 %v2219
        %v2316 = vunpack.c.l.b16 %v2220
        %v2317 = vunpack.c.l.b16 %v2221
        %v2318 = vunpack.c.l.b16 %v2222
        %v2319 = vunpack.c.l.b16 %v2223
        %v2320 = vunpack.c.l.b16 %v2224
        %v2321 = vunpack.c.l.b16 %v2225
        %v2322 = vunpack.c.l.b16 %v2226
        %v2323 = vunpack.c.l.b16 %v2227
        %v2324 = vunpack.c.l.b16 %v2228
        %v2325 = vpack.c.b16 %v2278, %v2277
        %v2326 = vpack.c.b16 %v2280, %v2279
        %v2327 = vpack.c.b16 %v2282, %v2281
        %v2328 = vpack.c.b16 %v2284, %v2283
        %v2329 = vpack.c.b16 %v2286, %v2285
        %v2330 = vpack.c.b16 %v2288, %v2287
        %v2331 = vpack.c.b16 %v2290, %v2289
        %v2332 = vpack.c.b16 %v2292, %v2291
        %v2333 = vpack.c.b16 %v2294, %v2293
        %v2334 = vpack.c.b16 %v2296, %v2295
        %v2335 = vpack.c.b16 %v2298, %v2297
        %v2336 = vpack.c.b16 %v2300, %v2299
        %v2337 = vpack.c.b16 %v2302, %v2301
        %v2338 = vpack.c.b16 %v2304, %v2303
        %v2339 = vpack.c.b16 %v2306, %v2305
        %v2340 = vpack.c.b16 %v2308, %v2307
        %v2341 = vpack.c.b16 %v2310, %v2309
        %v2342 = vpack.c.b16 %v2312, %v2311
        %v2343 = vpack.c.b16 %v2314, %v2313
        %v2344 = vpack.c.b16 %v2316, %v2315
        %v2345 = vpack.c.b16 %v2318, %v2317
        %v2346 = vpack.c.b16 %v2320, %v2319
        %v2347 = vpack.c.b16 %v2322, %v2321
        %v2348 = vpack.c.b16 %v2324, %v2323
        %2373 = vmatprep.subr.bf16.mxu0 0
        %2374 = vmatpush1.bf16.msra.mxu0 %v2332
        %2375 = vmatprep.subr.bf16.mxu0 0
        %2376 = vmatpush1.bf16.msra.mxu0 %v2331
        %2377 = vmatprep.subr.bf16.mxu0 0
        %2378 = vmatpush1.bf16.msra.mxu0 %v2330
        %2379 = vmatprep.subr.bf16.mxu0 0
        %2380 = vmatpush1.bf16.msra.mxu0 %v2329
        %2381 = vmatprep.subr.bf16.mxu0 0
        %2382 = vmatpush1.bf16.msra.mxu0 %v2328
        %2383 = vmatprep.subr.bf16.mxu0 0
        %2384 = vmatpush1.bf16.msra.mxu0 %v2327
        %2385 = vmatprep.subr.bf16.mxu0 0
        %2386 = vmatpush1.bf16.msra.mxu0 %v2326
        %2387 = vmatprep.subr.bf16.mxu0 0
        %2388 = vmatpush1.bf16.msra.mxu0 %v2325
        %2389 = vmatprep.subr.bf16.mxu0 0
        %2390 = vmatpush2.bf16.msra.mxu0 %v2340
        %2391 = vmatprep.subr.bf16.mxu0 0
        %2392 = vmatpush2.bf16.msra.mxu0 %v2339
        %2393 = vmatprep.subr.bf16.mxu0 0
        %2394 = vmatpush2.bf16.msra.mxu0 %v2338
        %2395 = vmatprep.subr.bf16.mxu0 0
        %2396 = vmatpush2.bf16.msra.mxu0 %v2337
        %2397 = vmatprep.subr.bf16.mxu0 0
        %2398 = vmatpush2.bf16.msra.mxu0 %v2336
        %2399 = vmatprep.subr.bf16.mxu0 0
        %2400 = vmatpush2.bf16.msra.mxu0 %v2335
        %2401 = vmatprep.subr.bf16.mxu0 0
        %2402 = vmatpush2.bf16.msra.mxu0 %v2334
        %2403 = vmatprep.subr.bf16.mxu0 0
        %2404 = vmatpush2.bf16.msra.mxu0 %v2333
        %2405 = vmatprep.mubr.bf16.mxu0 %v2175
        %2406 = vmatmul.mubr.bf16.gmra.mxu0 %v2174
        %v2407 = vpop.f32.mrf.mxu0
        %v2408 = vadd.f32 0.0, %v2407
        %v2409 = vpop.f32.mrf.mxu0
        %v2410 = vpop.f32.mrf.mxu0
        %v2411 = vadd.f32 0.0, %v2410
        %v2412 = vpop.f32.mrf.mxu0
        %2413 = vmatprep.mubr.bf16.mxu0 %v2176
        %2414 = vmatmul.mubr.bf16.gmra.mxu0 %v2175
        %v2415 = vpop.f32.mrf.mxu0
        %v2416 = vadd.f32 0.0, %v2415
        %v2417 = vpop.f32.mrf.mxu0
        %v2418 = vpop.f32.mrf.mxu0
        %v2419 = vadd.f32 0.0, %v2418
        %v2420 = vpop.f32.mrf.mxu0
        %2421 = vmatprep.mubr.bf16.mxu0 %v2177
        %2422 = vmatmul.mubr.bf16.gmra.mxu0 %v2176
        %v2423 = vpop.f32.mrf.mxu0
        %v2424 = vadd.f32 0.0, %v2423
        %v2425 = vpop.f32.mrf.mxu0
        %v2426 = vpop.f32.mrf.mxu0
        %v2427 = vadd.f32 0.0, %v2426
        %v2428 = vpop.f32.mrf.mxu0
        %2429 = vmatprep.mubr.bf16.mxu0 %v2178
        %2430 = vmatmul.mubr.bf16.gmra.mxu0 %v2177
        %v2431 = vpop.f32.mrf.mxu0
        %v2432 = vadd.f32 0.0, %v2431
        %v2433 = vpop.f32.mrf.mxu0
        %v2434 = vpop.f32.mrf.mxu0
        %v2435 = vadd.f32 0.0, %v2434
        %v2436 = vpop.f32.mrf.mxu0
        %2437 = vdwg.mxu0
        %2438 = vmatprep.subr.bf16.mxu0 0
        %2439 = vmatpush1.bf16.msra.mxu0 %v2348
        %2440 = vmatprep.subr.bf16.mxu0 0
        %2441 = vmatpush1.bf16.msra.mxu0 %v2347
        %2442 = vmatprep.subr.bf16.mxu0 0
        %2443 = vmatpush1.bf16.msra.mxu0 %v2346
        %2444 = vmatprep.subr.bf16.mxu0 0
        %2445 = vmatpush1.bf16.msra.mxu0 %v2345
        %2446 = vmatprep.subr.bf16.mxu0 0
        %2447 = vmatpush1.bf16.msra.mxu0 %v2344
        %2448 = vmatprep.subr.bf16.mxu0 0
        %2449 = vmatpush1.bf16.msra.mxu0 %v2343
        %2450 = vmatprep.subr.bf16.mxu0 0
        %2451 = vmatpush1.bf16.msra.mxu0 %v2342
        %2452 = vmatprep.subr.bf16.mxu0 0
        %2453 = vmatpush1.bf16.msra.mxu0 %v2341
        %2454 = vmatprep.subr.bf16.mxu0 0
        %2455 = vmatpush2.bf16.msra.mxu0 0
        %2456 = vmatprep.subr.bf16.mxu0 0
        %2457 = vmatpush2.bf16.msra.mxu0 0
        %2458 = vmatprep.subr.bf16.mxu0 0
        %2459 = vmatpush2.bf16.msra.mxu0 0
        %2460 = vmatprep.subr.bf16.mxu0 0
        %2461 = vmatpush2.bf16.msra.mxu0 0
        %2462 = vmatprep.subr.bf16.mxu0 0
        %2463 = vmatpush2.bf16.msra.mxu0 0
        %2464 = vmatprep.subr.bf16.mxu0 0
        %2465 = vmatpush2.bf16.msra.mxu0 0
        %2466 = vmatprep.subr.bf16.mxu0 0
        %2467 = vmatpush2.bf16.msra.mxu0 0
        %2468 = vmatprep.subr.bf16.mxu0 0
        %2469 = vmatpush2.bf16.msra.mxu0 0
        %2470 = vmatprep.mubr.bf16.mxu0 0
        %2471 = vmatmul.mubr.bf16.gmra.mxu0 %v2176
        %v2472 = vpop.f32.mrf.mxu0
        %v2473 = vadd.f32 %v2408, %v2472
        %v2474 = vpop.f32.mrf.mxu0
        %v2475 = vpop.f32.mrf.mxu0
        %v2476 = vadd.f32 %v2411, %v2475
        %v2477 = vpop.f32.mrf.mxu0
        %2478 = vmatprep.mubr.bf16.mxu0 0
        %2479 = vmatmul.mubr.bf16.gmra.mxu0 %v2177
        %v2480 = vpop.f32.mrf.mxu0
        %v2481 = vadd.f32 %v2416, %v2480
        %v2482 = vpop.f32.mrf.mxu0
        %v2483 = vpop.f32.mrf.mxu0
        %v2484 = vadd.f32 %v2419, %v2483
        %v2485 = vpop.f32.mrf.mxu0
        %2486 = vmatprep.mubr.bf16.mxu0 0
        %2487 = vmatmul.mubr.bf16.gmra.mxu0 %v2178
        %v2488 = vpop.f32.mrf.mxu0
        %v2489 = vadd.f32 %v2424, %v2488
        %v2490 = vpop.f32.mrf.mxu0
        %v2491 = vpop.f32.mrf.mxu0
        %v2492 = vadd.f32 %v2427, %v2491
        %v2493 = vpop.f32.mrf.mxu0
        %2494 = vmatprep.mubr.bf16.mxu0 0
        %2495 = vmatmul.mubr.bf16.gmra.mxu0 %v2179
        %v2496 = vpop.f32.mrf.mxu0
        %v2497 = vadd.f32 %v2432, %v2496
        %v2498 = vpop.f32.mrf.mxu0
        %v2499 = vpop.f32.mrf.mxu0
        %v2500 = vadd.f32 %v2435, %v2499
        %v2501 = vpop.f32.mrf.mxu0
        %2502 = vdwg.mxu0
        %v2503 = vadd.f32 %v2071, %v2473
        %v2504 = vadd.f32 %v2074, %v2476
        %v2505 = vadd.f32 %v2079, %v2481
        %v2506 = vadd.f32 %v2082, %v2484
        %v2507 = vadd.f32 %v2087, %v2489
        %v2508 = vadd.f32 %v2090, %v2492
        %v2509 = vadd.f32 %v2095, %v2497
        %v2510 = vadd.f32 %v2098, %v2500
        %v2511 = vld [vmem:[%s8] sm:$0x1]
        %v2513 = vlaneseq
        %v2514 = vshrl.u32 %v2513, 7
        %v2515 = vsub.s32 0, %v2514
        %v2516 = vrot.slane %v2511, %v2515
        %v2518 = vadd.f32 %v2503, %v2516
        %v2519 = vadd.f32 %v2504, %v2516
        %v2520 = vadd.f32 %v2505, %v2516
        %v2521 = vadd.f32 %v2506, %v2516
        %v2522 = vadd.f32 %v2507, %v2516
        %v2523 = vadd.f32 %v2508, %v2516
        %v2524 = vadd.f32 %v2509, %v2516
        %v2525 = vadd.f32 %v2510, %v2516
        %v2526 = vsub.f32 0.0, %v2518
        %v2527 = vsub.f32 0.0, %v2519
        %v2528 = vsub.f32 0.0, %v2520
        %v2529 = vsub.f32 0.0, %v2521
        %v2530 = vsub.f32 0.0, %v2522
        %v2531 = vsub.f32 0.0, %v2523
        %v2532 = vsub.f32 0.0, %v2524
        %v2533 = vsub.f32 0.0, %v2525
        %v2534 = vmul.f32 %v2526, 1.442695
        %v2535 = vpow.pop %v2534
        %v2536 = vmul.f32 %v2527, 1.442695
        %v2537 = vpow.pop %v2536
        %v2538 = vmul.f32 %v2528, 1.442695
        %v2539 = vpow.pop %v2538
        %v2540 = vmul.f32 %v2529, 1.442695
        %v2541 = vpow.pop %v2540
        %v2542 = vmul.f32 %v2530, 1.442695
        %v2543 = vpow.pop %v2542
        %v2544 = vmul.f32 %v2531, 1.442695
        %v2545 = vpow.pop %v2544
        %v2546 = vmul.f32 %v2532, 1.442695
        %v2547 = vpow.pop %v2546
        %v2548 = vmul.f32 %v2533, 1.442695
        %v2549 = vpow.pop %v2548
        %v2550 = vadd.f32 %v2535, 1.0
        %v2551 = vadd.f32 %v2537, 1.0
        %v2552 = vadd.f32 %v2539, 1.0
        %v2553 = vadd.f32 %v2541, 1.0
        %v2554 = vadd.f32 %v2543, 1.0
        %v2555 = vadd.f32 %v2545, 1.0
        %v2556 = vadd.f32 %v2547, 1.0
        %v2557 = vadd.f32 %v2549, 1.0
        %v2558 = vrcp.pop %v2550
        %v2559 = vrcp.pop %v2551
        %v2560 = vrcp.pop %v2552
        %v2561 = vrcp.pop %v2553
        %v2562 = vrcp.pop %v2554
        %v2563 = vrcp.pop %v2555
        %v2564 = vrcp.pop %v2556
        %v2565 = vrcp.pop %v2557
        %v2566 = vmul.f32 %v2518, %v2558
        %v2567 = vmul.f32 %v2519, %v2559
        %v2568 = vmul.f32 %v2520, %v2560
        %v2569 = vmul.f32 %v2521, %v2561
        %v2570 = vmul.f32 %v2522, %v2562
        %v2571 = vmul.f32 %v2523, %v2563
        %v2572 = vmul.f32 %v2524, %v2564
        %v2573 = vmul.f32 %v2525, %v2565
        %v2574 = vadd.f32 %v862, %v2566
        %v2575 = vadd.f32 %v864, %v2567
        %v2576 = vadd.f32 %v866, %v2568
        %v2577 = vadd.f32 %v868, %v2569
        %v2578 = vadd.f32 %v870, %v2570
        %v2579 = vadd.f32 %v872, %v2571
        %v2580 = vadd.f32 %v874, %v2572
        %v2581 = vadd.f32 %v876, %v2573
        %v2582 = vpack.c.bf16 %v2575, %v2574
        %v2583 = vpack.c.bf16 %v865, %v863
        %v2584 = vpack.c.bf16 %v2577, %v2576
        %v2585 = vpack.c.bf16 %v869, %v867
        %v2586 = vpack.c.bf16 %v2579, %v2578
        %v2587 = vpack.c.bf16 %v873, %v871
        %v2588 = vpack.c.bf16 %v2581, %v2580
        %v2589 = vpack.c.bf16 %v877, %v875
        %v2590 = vld [vmem:[#allocation13] sm:$0xf]
        %v2591 = vld [vmem:[#allocation13 + $0x4] sm:$0xf]
        %v2592 = vld [vmem:[#allocation13 + $0x8] sm:$0xf]
        %v2593 = vld [vmem:[#allocation13 + $0xc] sm:$0xf]
        %v2594 = vld [vmem:[#allocation13 + $0x10] sm:$0xf]
        %v2595 = vld [vmem:[#allocation13 + $0x14] sm:$0xf]
        %v2596 = vld [vmem:[#allocation13 + $0x18] sm:$0xf]
        %v2597 = vld [vmem:[#allocation13 + $0x1c] sm:$0xf]
        %v2598 = vld [vmem:[#allocation13 + $0x20] sm:$0xf]
        %v2599 = vld [vmem:[#allocation13 + $0x24] sm:$0xf]
        %v2600 = vld [vmem:[#allocation13 + $0x28] sm:$0xf]
        %v2601 = vld [vmem:[#allocation13 + $0x2c] sm:$0xf]
        %v2602 = vld [vmem:[#allocation13 + $0x30] sm:$0xf]
        %v2603 = vld [vmem:[#allocation13 + $0x34] sm:$0xf]
        %v2604 = vld [vmem:[#allocation13 + $0x38] sm:$0xf]
        %v2605 = vld [vmem:[#allocation13 + $0x3c] sm:$0xf]
        %v2606 = vld [vmem:[#allocation13 + $0x40] sm:$0xf]
        %v2607 = vld [vmem:[#allocation13 + $0x44] sm:$0xf]
        %v2608 = vld [vmem:[#allocation13 + $0x48] sm:$0xf]
        %v2609 = vld [vmem:[#allocation13 + $0x4c] sm:$0xf]
        %v2610 = vld [vmem:[#allocation13 + $0x50] sm:$0xf]
        %v2611 = vld [vmem:[#allocation13 + $0x54] sm:$0xf]
        %v2612 = vld [vmem:[#allocation13 + $0x58] sm:$0xf]
        %v2613 = vld [vmem:[#allocation13 + $0x5c] sm:$0xf]
        %v2614 = vld [vmem:[#allocation13 + $0x60] sm:$0xf]
        %v2615 = vld [vmem:[#allocation13 + $0x64] sm:$0xf]
        %v2616 = vld [vmem:[#allocation13 + $0x68] sm:$0xf]
        %v2617 = vld [vmem:[#allocation13 + $0x6c] sm:$0xf]
        %v2618 = vld [vmem:[#allocation13 + $0x70] sm:$0xf]
        %v2619 = vld [vmem:[#allocation13 + $0x74] sm:$0xf]
        %v2620 = vld [vmem:[#allocation13 + $0x78] sm:$0xf]
        %v2621 = vld [vmem:[#allocation13 + $0x7c] sm:$0xf]
        %v2622 = vld [vmem:[%s10] sm:$0x1]
        %v2624 = vlaneseq
        %v2625 = vshrl.u32 %v2624, 7
        %v2626 = vsub.s32 0, %v2625
        %v2627 = vrot.slane %v2622, %v2626
        %v2661 = vunpack.c.l.b16 %v2590
        %v2662 = vunpack.c.l.b16 %v2591
        %v2663 = vunpack.c.l.b16 %v2592
        %v2664 = vunpack.c.l.b16 %v2593
        %v2665 = vunpack.c.l.b16 %v2594
        %v2666 = vunpack.c.l.b16 %v2595
        %v2667 = vunpack.c.l.b16 %v2596
        %v2668 = vunpack.c.l.b16 %v2597
        %v2669 = vunpack.c.l.b16 %v2598
        %v2670 = vunpack.c.l.b16 %v2599
        %v2671 = vunpack.c.l.b16 %v2600
        %v2672 = vunpack.c.l.b16 %v2601
        %v2673 = vunpack.c.l.b16 %v2602
        %v2674 = vunpack.c.l.b16 %v2603
        %v2675 = vunpack.c.l.b16 %v2604
        %v2676 = vunpack.c.l.b16 %v2605
        %v2677 = vunpack.c.l.b16 %v2606
        %v2678 = vunpack.c.l.b16 %v2607
        %v2679 = vunpack.c.l.b16 %v2608
        %v2680 = vunpack.c.l.b16 %v2609
        %v2681 = vunpack.c.l.b16 %v2610
        %v2682 = vunpack.c.l.b16 %v2611
        %v2683 = vunpack.c.l.b16 %v2612
        %v2684 = vunpack.c.l.b16 %v2613
        %v2685 = vunpack.c.l.b16 %v2614
        %v2686 = vunpack.c.l.b16 %v2615
        %v2687 = vunpack.c.l.b16 %v2616
        %v2688 = vunpack.c.l.b16 %v2617
        %v2689 = vunpack.c.l.b16 %v2618
        %v2690 = vunpack.c.l.b16 %v2619
        %v2691 = vunpack.c.l.b16 %v2620
        %v2692 = vunpack.c.l.b16 %v2621
        %v2693 = vpack.c.b16 %v2662, %v2661
        %v2694 = vpack.c.b16 %v2664, %v2663
        %v2695 = vpack.c.b16 %v2666, %v2665
        %v2696 = vpack.c.b16 %v2668, %v2667
        %v2697 = vpack.c.b16 %v2670, %v2669
        %v2698 = vpack.c.b16 %v2672, %v2671
        %v2699 = vpack.c.b16 %v2674, %v2673
        %v2700 = vpack.c.b16 %v2676, %v2675
        %v2701 = vpack.c.b16 %v2678, %v2677
        %v2702 = vpack.c.b16 %v2680, %v2679
        %v2703 = vpack.c.b16 %v2682, %v2681
        %v2704 = vpack.c.b16 %v2684, %v2683
        %v2705 = vpack.c.b16 %v2686, %v2685
        %v2706 = vpack.c.b16 %v2688, %v2687
        %v2707 = vpack.c.b16 %v2690, %v2689
        %v2708 = vpack.c.b16 %v2692, %v2691
        %2725 = vmatprep.subr.bf16.mxu0 0
        %2726 = vmatpush1.bf16.msra.mxu0 %v2700
        %2727 = vmatprep.subr.bf16.mxu0 0
        %2728 = vmatpush1.bf16.msra.mxu0 %v2699
        %2729 = vmatprep.subr.bf16.mxu0 0
        %2730 = vmatpush1.bf16.msra.mxu0 %v2698
        %2731 = vmatprep.subr.bf16.mxu0 0
        %2732 = vmatpush1.bf16.msra.mxu0 %v2697
        %2733 = vmatprep.subr.bf16.mxu0 0
        %2734 = vmatpush1.bf16.msra.mxu0 %v2696
        %2735 = vmatprep.subr.bf16.mxu0 0
        %2736 = vmatpush1.bf16.msra.mxu0 %v2695
        %2737 = vmatprep.subr.bf16.mxu0 0
        %2738 = vmatpush1.bf16.msra.mxu0 %v2694
        %2739 = vmatprep.subr.bf16.mxu0 0
        %2740 = vmatpush1.bf16.msra.mxu0 %v2693
        %2741 = vmatprep.subr.bf16.mxu0 0
        %2742 = vmatpush2.bf16.msra.mxu0 %v2708
        %2743 = vmatprep.subr.bf16.mxu0 0
        %2744 = vmatpush2.bf16.msra.mxu0 %v2707
        %2745 = vmatprep.subr.bf16.mxu0 0
        %2746 = vmatpush2.bf16.msra.mxu0 %v2706
        %2747 = vmatprep.subr.bf16.mxu0 0
        %2748 = vmatpush2.bf16.msra.mxu0 %v2705
        %2749 = vmatprep.subr.bf16.mxu0 0
        %2750 = vmatpush2.bf16.msra.mxu0 %v2704
        %2751 = vmatprep.subr.bf16.mxu0 0
        %2752 = vmatpush2.bf16.msra.mxu0 %v2703
        %2753 = vmatprep.subr.bf16.mxu0 0
        %2754 = vmatpush2.bf16.msra.mxu0 %v2702
        %2755 = vmatprep.subr.bf16.mxu0 0
        %2756 = vmatpush2.bf16.msra.mxu0 %v2701
        %2757 = vmatprep.mubr.bf16.mxu0 %v2583
        %2758 = vmatmul.mubr.bf16.gmra.mxu0 %v2582
        %v2759 = vpop.f32.mrf.mxu0
        %v2760 = vadd.f32 %v2627, %v2759
        %v2761 = vpop.f32.mrf.mxu0
        %v2762 = vpop.f32.mrf.mxu0
        %v2763 = vadd.f32 %v2627, %v2762
        %v2764 = vpop.f32.mrf.mxu0
        %2765 = vmatprep.mubr.bf16.mxu0 %v2585
        %2766 = vmatmul.mubr.bf16.gmra.mxu0 %v2584
        %v2767 = vpop.f32.mrf.mxu0
        %v2768 = vadd.f32 %v2627, %v2767
        %v2769 = vpop.f32.mrf.mxu0
        %v2770 = vpop.f32.mrf.mxu0
        %v2771 = vadd.f32 %v2627, %v2770
        %v2772 = vpop.f32.mrf.mxu0
        %2773 = vmatprep.mubr.bf16.mxu0 %v2587
        %2774 = vmatmul.mubr.bf16.gmra.mxu0 %v2586
        %v2775 = vpop.f32.mrf.mxu0
        %v2776 = vadd.f32 %v2627, %v2775
        %v2777 = vpop.f32.mrf.mxu0
        %v2778 = vpop.f32.mrf.mxu0
        %v2779 = vadd.f32 %v2627, %v2778
        %v2780 = vpop.f32.mrf.mxu0
        %2781 = vmatprep.mubr.bf16.mxu0 %v2589
        %2782 = vmatmul.mubr.bf16.gmra.mxu0 %v2588
        %v2783 = vpop.f32.mrf.mxu0
        %v2784 = vadd.f32 %v2627, %v2783
        %v2785 = vpop.f32.mrf.mxu0
        %v2786 = vpop.f32.mrf.mxu0
        %v2787 = vadd.f32 %v2627, %v2786
        %v2788 = vpop.f32.mrf.mxu0
        %2789 = vdwg.mxu0
        %v2790 = vsub.f32 0.0, %v2760
        %v2791 = vsub.f32 0.0, %v2763
        %v2792 = vsub.f32 0.0, %v2768
        %v2793 = vsub.f32 0.0, %v2771
        %v2794 = vsub.f32 0.0, %v2776
        %v2795 = vsub.f32 0.0, %v2779
        %v2796 = vsub.f32 0.0, %v2784
        %v2797 = vsub.f32 0.0, %v2787
        %v2798 = vmul.f32 %v2790, 1.442695
        %v2799 = vpow.pop %v2798
        %v2800 = vmul.f32 %v2791, 1.442695
        %v2801 = vpow.pop %v2800
        %v2802 = vmul.f32 %v2792, 1.442695
        %v2803 = vpow.pop %v2802
        %v2804 = vmul.f32 %v2793, 1.442695
        %v2805 = vpow.pop %v2804
        %v2806 = vmul.f32 %v2794, 1.442695
        %v2807 = vpow.pop %v2806
        %v2808 = vmul.f32 %v2795, 1.442695
        %v2809 = vpow.pop %v2808
        %v2810 = vmul.f32 %v2796, 1.442695
        %v2811 = vpow.pop %v2810
        %v2812 = vmul.f32 %v2797, 1.442695
        %v2813 = vpow.pop %v2812
        %v2814 = vadd.f32 %v2799, 1.0
        %v2815 = vadd.f32 %v2801, 1.0
        %v2816 = vadd.f32 %v2803, 1.0
        %v2817 = vadd.f32 %v2805, 1.0
        %v2818 = vadd.f32 %v2807, 1.0
        %v2819 = vadd.f32 %v2809, 1.0
        %v2820 = vadd.f32 %v2811, 1.0
        %v2821 = vadd.f32 %v2813, 1.0
        %v2822 = vrcp.pop %v2814
        %v2823 = vrcp.pop %v2815
        %v2824 = vrcp.pop %v2816
        %v2825 = vrcp.pop %v2817
        %v2826 = vrcp.pop %v2818
        %v2827 = vrcp.pop %v2819
        %v2828 = vrcp.pop %v2820
        %v2829 = vrcp.pop %v2821
        %v2830 = vmul.f32 %v2760, %v2822
        %v2831 = vmul.f32 %v2763, %v2823
        %v2832 = vmul.f32 %v2768, %v2824
        %v2833 = vmul.f32 %v2771, %v2825
        %v2834 = vmul.f32 %v2776, %v2826
        %v2835 = vmul.f32 %v2779, %v2827
        %v2836 = vmul.f32 %v2784, %v2828
        %v2837 = vmul.f32 %v2787, %v2829
        %2838 = vst [vmem:[%s565] sm:$0xff] %v2830
        %2839 = vst [vmem:[%s565 + $0x8] sm:$0xff] %v2831
        %2840 = vst [vmem:[%s565 + $0x10] sm:$0xff] %v2832
        %2841 = vst [vmem:[%s565 + $0x18] sm:$0xff] %v2833
        %2842 = vst [vmem:[%s565 + $0x20] sm:$0xff] %v2834
        %2843 = vst [vmem:[%s565 + $0x28] sm:$0xff] %v2835
        %2844 = vst [vmem:[%s565 + $0x30] sm:$0xff] %v2836
        %2845 = vst [vmem:[%s565 + $0x38] sm:$0xff] %v2837
        %s2846 = sand.u32 %s307, 1
        %s2847 = scalar_lea.sflag [#allocation4], %s2846
        %s2848 = sand.u32 %s307, 1
        %s2849 = smul.addr %s2848, 64
        %s2850 = scalar_lea.vmem [#allocation14], %s2849
        // Predicated region
        $region93: #{tpu_custom_call.1} parent=63 // pred_check
          %p2851 = pneg %p317
        $region94: #{tpu_custom_call.1} parent=63 // pred_check_branch
          %2853 = sbr.rel (%p2851) target = $region96
        $region95: #{tpu_custom_call.1} parent=63 // pred_region
          %s2854 = smul.u32 8, %s38
          %s2856 = ssub.s32 1024, 1024
          %2857 = vsyncadd %s2847, %s2856
          %s2858 = smul.addr %s37, 32
          %s2859 = sadd.s32 %s2854, %s2858
          %s2860 = smul.addr %s2859, 128
          %s2861 = scalar_lea.hbm %s11, %s2860
          %s2862 = sshll.u32 %s2850, 4
          %s2863 = int_to_ptr.vmem [resolvable:$true] %s2862
          %2868 = dma.vmem_to_hbm [thread:$0]  %s2863, 1024, %s2861, %s2847, 128, 128, 8
        $region96: #{tpu_custom_call.1} parent=63 // pred_fallthru
          _
      $region64: #{tpu_custom_call.1} parent=5 // pred_fallthru
        _
      %p2869 = scmp.le.s32.totalorder 2, %s28
      // Predicated region
      $region97: #{tpu_custom_call.1} parent=5 // pred_check
        %p2870 = pneg %p2869
      $region98: #{tpu_custom_call.1} parent=5 // pred_check_branch
        %2872 = sbr.rel (%p2870) target = $region100
      $region99: #{tpu_custom_call.1} parent=5 // pred_region
        %s2873 = ssub.s32 %s28, 2
        // Predicated region
        $region101: #{tpu_custom_call.1} parent=99 // pred_check
          %p2874 = pneg %p323
        $region102: #{tpu_custom_call.1} parent=99 // pred_check_branch
          %2876 = sbr.rel (%p2874) target = $region104
        $region103: #{tpu_custom_call.1} parent=99 // pred_region
          %s2877 = sand.u32 %s308, 1
          %s2878 = scalar_lea.sflag [#allocation4], %s2877
          %s2879 = sand.u32 %s308, 1
          %s2880 = smul.addr %s2879, 64
          %s2881 = scalar_lea.vmem [#allocation14], %s2880
          %2882 = dma.done %s2878, 1024
        $region104: #{tpu_custom_call.1} parent=99 // pred_fallthru
          _
      $region100: #{tpu_custom_call.1} parent=5 // pred_fallthru
        _
    $region6: #{tpu_custom_call.1} parent=1 // loop_footer
      %s32 = sadd.s32 1, %s28
    $region7: #{tpu_custom_call.1} parent=1 // loop_footer_branch
      %27 = sbr.rel target = $region3
    $region8: #{tpu_custom_call.1} parent=1 // loop_exit
      _
    %2883 = vsyncpa [#allocation3], 1
    %s2884 = scalar_lea.sflag [#allocation3], 1
    %2885 = vsyncpa %s2884, 1
    %2886 = vsyncpa [#allocation6], 1
    %s2887 = scalar_lea.sflag [#allocation6], 1
    %2888 = vsyncpa %s2887, 1
    %2889 = vsyncpa [#allocation9], 1
    %2890 = vsyncpa [#allocation12], 1
    %2891 = vsyncpa [#allocation4], 1
    %s2892 = scalar_lea.sflag [#allocation4], 1
    %2893 = vsyncpa %s2892, 1

</llo_original>
